<compile_context>
chip_gen: v5e
topology: v5e:2x2
jax: 0.10.0
libtpu: 0.0.40
codegen_flags: <defaults>
</compile_context>

<pallas_src>
from functools import partial

import jax
import jax.numpy as jnp
from jax import lax
from jax.experimental import pallas as pl
from jax.experimental.pallas import tpu as pltpu

C_LANE = 128                      # lane width: pad output channels to this
MATMUL_DTYPE = jnp.bfloat16       # MXU input dtype (accumulation stays f32)
VMEM_LIMIT = 48 * 1024 * 1024     # leaves headroom even on v7x (64 MiB VMEM)


def _round_up(x, m):
    return (x + m - 1) // m * m


# ----------------------------------------------------------------------------
# Kernel A: tiled matmul + per-tile BN partial statistics
# ----------------------------------------------------------------------------
def _matmul_stats_kernel(p_ref, w_ref, y_ref, stat_ref):
    # p_ref: [tm, K] bf16 patches, w_ref: [K, C] bf16 weights
    y = jnp.dot(p_ref[...], w_ref[...], preferred_element_type=jnp.float32)
    y_ref[...] = y
    row_sum = jnp.sum(y, axis=0, keepdims=True)          # [1, C]
    row_ss = jnp.sum(y * y, axis=0, keepdims=True)       # [1, C]
    pad = jnp.zeros((6, y.shape[1]), jnp.float32)
    stat_ref[...] = jnp.concatenate([row_sum, row_ss, pad], axis=0)  # [8, C]


def conv_matmul_stats(p, w, *, tm):
    """p: [M_pad, K] bf16, w: [K, C_pad] bf16 -> (y f32 [M_pad,C_pad], sum, sumsq)."""
    Mp, K = p.shape
    C = w.shape[1]
    nt = Mp // tm
    flops = 2 * Mp * K * C
    bytes_accessed = (p.size * p.dtype.itemsize + w.size * w.dtype.itemsize
                      + Mp * C * 4 + nt * 8 * C * 4)
    y, stats = pl.pallas_call(
        _matmul_stats_kernel,
        out_shape=(jax.ShapeDtypeStruct((Mp, C), jnp.float32),
                   jax.ShapeDtypeStruct((nt * 8, C), jnp.float32)),
        grid=(nt,),
        in_specs=[pl.BlockSpec((tm, K), lambda i: (i, 0)),
                  pl.BlockSpec((K, C), lambda i: (0, 0))],
        out_specs=(pl.BlockSpec((tm, C), lambda i: (i, 0)),
                   pl.BlockSpec((8, C), lambda i: (i, 0))),
        compiler_params=pltpu.CompilerParams(
            dimension_semantics=("parallel",),
            vmem_limit_bytes=VMEM_LIMIT),
        cost_estimate=pl.CostEstimate(flops=flops, transcendentals=0,
                                      bytes_accessed=bytes_accessed),
    )(p, w)
    st = stats.reshape(nt, 8, C)
    return y, jnp.sum(st[:, 0, :], axis=0), jnp.sum(st[:, 1, :], axis=0)


# ----------------------------------------------------------------------------
# Kernel B: tiled BN epilogue  out = relu?( y*s + t [+ yr*sr + tr] )
# ----------------------------------------------------------------------------
def _bn_apply_kernel(y_ref, s_ref, t_ref, o_ref, *, relu):
    out = y_ref[...] * s_ref[...] + t_ref[...]
    if relu:
        out = jnp.maximum(out, 0.0)
    o_ref[...] = out.astype(o_ref.dtype)


def _bn_apply_res_kernel(y_ref, s_ref, t_ref, yr_ref, sr_ref, tr_ref, o_ref,
                         *, relu):
    out = (y_ref[...] * s_ref[...] + t_ref[...]
           + yr_ref[...] * sr_ref[...] + tr_ref[...])
    if relu:
        out = jnp.maximum(out, 0.0)
    o_ref[...] = out.astype(o_ref.dtype)


def bn_apply(y, s, t, *, relu, out_dtype, tm, residual=None):
    Mp, C = y.shape
    nt = Mp // tm
    row_spec = pl.BlockSpec((tm, C), lambda i: (i, 0))
    vec_spec = pl.BlockSpec((1, C), lambda i: (0, 0))
    if residual is None:
        kernel = partial(_bn_apply_kernel, relu=relu)
        in_specs = [row_spec, vec_spec, vec_spec]
        args = (y, s, t)
    else:
        yr, sr, tr = residual
        kernel = partial(_bn_apply_res_kernel, relu=relu)
        in_specs = [row_spec, vec_spec, vec_spec, row_spec, vec_spec, vec_spec]
        args = (y, s, t, yr, sr, tr)
    bytes_accessed = sum(a.size * a.dtype.itemsize for a in args) \
        + Mp * C * jnp.dtype(out_dtype).itemsize
    return pl.pallas_call(
        kernel,
        out_shape=jax.ShapeDtypeStruct((Mp, C), out_dtype),
        grid=(nt,),
        in_specs=in_specs,
        out_specs=row_spec,
        compiler_params=pltpu.CompilerParams(
            dimension_semantics=("parallel",),
            vmem_limit_bytes=VMEM_LIMIT),
        cost_estimate=pl.CostEstimate(flops=4 * Mp * C, transcendentals=0,
                                      bytes_accessed=bytes_accessed),
    )(*args)


# ----------------------------------------------------------------------------
# Plain-JAX glue: im2col, weight flattening, BN fold (tiny C-length math)
# ----------------------------------------------------------------------------
def im2col_3x3(x_nhwc, stride):
    """3x3 conv, padding=1 -> patches [N*Ho*Wo, 9*C], tap order (ki, kj, c)."""
    N, H, W, C = x_nhwc.shape
    xp = jnp.pad(x_nhwc, ((0, 0), (1, 1), (1, 1), (0, 0)))
    Ho = (H - 1) // stride + 1
    Wo = (W - 1) // stride + 1
    cols = []
    for ki in range(3):
        for kj in range(3):
            cols.append(xp[:, ki: ki + (Ho - 1) * stride + 1: stride,
                           kj: kj + (Wo - 1) * stride + 1: stride, :])
    p = jnp.concatenate(cols, axis=-1)
    return p.reshape(N * Ho * Wo, 9 * C), Ho, Wo


def _flatten_w3x3(w_oihw):
    # [Cout, Cin, 3, 3] -> [9*Cin, Cout] matching im2col tap order (ki, kj, c)
    cout, cin = w_oihw.shape[0], w_oihw.shape[1]
    return jnp.transpose(w_oihw, (2, 3, 1, 0)).reshape(9 * cin, cout)


def _fold_bn(total_sum, total_ss, count, gamma, beta, eps=1e-5):
    """Fold training-mode BN into per-channel scale s and shift t."""
    mean = (total_sum / count).reshape(1, -1)
    var = jnp.maximum((total_ss / count).reshape(1, -1) - mean * mean, 0.0)
    s = gamma * lax.rsqrt(var + eps)
    t = beta - mean * s
    return s, t


def _pad2(a, rows, cols):
    return jnp.pad(a, ((0, rows - a.shape[0]), (0, cols - a.shape[1])))


# ----------------------------------------------------------------------------
# BasicBlock forward
# ----------------------------------------------------------------------------
def basic_block_forward(x_nchw, params, stride):
    x = jnp.transpose(x_nchw, (0, 2, 3, 1)).astype(jnp.float32)   # NCHW->NHWC
    N, H, W, Cin = x.shape
    Cout = params["w1"].shape[0]
    Ho = (H - 1) // stride + 1
    Wo = (W - 1) // stride + 1
    M = N * Ho * Wo
    tm = min(512, _round_up(M, 8))
    M_pad = _round_up(M, tm)
    C_pad = _round_up(Cout, C_LANE)

    x_lo = x.astype(MATMUL_DTYPE)

    def pad_vec(v):                               # (1, Cout) -> (1, C_pad)
        return jnp.pad(v.reshape(1, -1), ((0, 0), (0, C_pad - Cout)))

    # ---- conv1 (3x3, stride) -> bn1 fold -> relu -------------------------
    p1, _, _ = im2col_3x3(x_lo, stride)                     # [M, 9*Cin] bf16
    p1 = _pad2(p1, M_pad, p1.shape[1])
    w1 = _pad2(_flatten_w3x3(params["w1"]), 9 * Cin, C_pad).astype(MATMUL_DTYPE)
    y1, sum1, ss1 = conv_matmul_stats(p1, w1, tm=tm)
    s1, t1 = _fold_bn(sum1, ss1, M, pad_vec(params["g1"]), pad_vec(params["b1"]))
    h1 = bn_apply(y1, s1, t1, relu=True, out_dtype=MATMUL_DTYPE, tm=tm)

    # ---- conv2 (3x3, stride 1) -> bn2 fold -------------------------------
    h1_nhwc = h1[:M, :Cout].reshape(N, Ho, Wo, Cout)        # bf16, un-padded
    p2, _, _ = im2col_3x3(h1_nhwc, 1)                       # [M, 9*Cout] bf16
    p2 = _pad2(p2, M_pad, p2.shape[1])
    w2 = _pad2(_flatten_w3x3(params["w2"]), 9 * Cout, C_pad).astype(MATMUL_DTYPE)
    y2, sum2, ss2 = conv_matmul_stats(p2, w2, tm=tm)
    s2, t2 = _fold_bn(sum2, ss2, M, pad_vec(params["g2"]), pad_vec(params["b2"]))

    # ---- shortcut branch (projection or identity), fused into epilogue ---
    if stride != 1 or Cin != Cout:
        xs = x_lo[:, ::stride, ::stride, :].reshape(M, Cin)
        xs = _pad2(xs, M_pad, Cin)
        wsc = jnp.transpose(params["wsc"], (2, 3, 1, 0)).reshape(Cin, Cout)
        wsc = _pad2(wsc, Cin, C_pad).astype(MATMUL_DTYPE)
        ysc, sumsc, sssc = conv_matmul_stats(xs, wsc, tm=tm)
        s_sc, t_sc = _fold_bn(sumsc, sssc, M,
                              pad_vec(params["gsc"]), pad_vec(params["bsc"]))
    else:
        ysc = _pad2(x.reshape(M, Cin), M_pad, C_pad)        # identity (f32)
        s_sc = jnp.ones((1, C_pad), jnp.float32)
        t_sc = jnp.zeros((1, C_pad), jnp.float32)

    # ---- bn2 affine + shortcut affine + add + relu, single epilogue ------
    out = bn_apply(y2, s2, t2, relu=True, out_dtype=jnp.float32, tm=tm,
                   residual=(ysc, s_sc, t_sc))
    out = out[:M, :Cout].reshape(N, Ho, Wo, Cout)
    return jnp.transpose(out, (0, 3, 1, 2))                 # NHWC -> NCHW


# ----------------------------------------------------------------------------
# Pure-JAX f32 reference (PyTorch semantics, training-mode BN)
# ----------------------------------------------------------------------------
def _ref_conv(x_nhwc, w_oihw, stride, pad):
    w_hwio = jnp.transpose(w_oihw, (2, 3, 1, 0))
    return lax.conv_general_dilated(
        x_nhwc, w_hwio, window_strides=(stride, stride),
        padding=((pad, pad), (pad, pad)),
        dimension_numbers=("NHWC", "HWIO", "NHWC"))


def _ref_bn(y, g, b, eps=1e-5):
    mean = jnp.mean(y, axis=(0, 1, 2), keepdims=True)
    var = jnp.mean(jnp.square(y - mean), axis=(0, 1, 2), keepdims=True)
    return ((y - mean) * lax.rsqrt(var + eps) * g.reshape(1, 1, 1, -1)
            + b.reshape(1, 1, 1, -1))


def basic_block_reference(x_nchw, params, stride):
    x = jnp.transpose(x_nchw, (0, 2, 3, 1)).astype(jnp.float32)
    Cin, Cout = x.shape[-1], params["w1"].shape[0]
    h = jnp.maximum(_ref_bn(_ref_conv(x, params["w1"], stride, 1),
                            params["g1"], params["b1"]), 0.0)
    main = _ref_bn(_ref_conv(h, params["w2"], 1, 1), params["g2"], params["b2"])
    if stride != 1 or Cin != Cout:
        sc = _ref_bn(_ref_conv(x, params["wsc"], stride, 0),
                     params["gsc"], params["bsc"])
    else:
        sc = x
    out = jnp.maximum(main + sc, 0.0)
    return jnp.transpose(out, (0, 3, 1, 2))


# ----------------------------------------------------------------------------
def _make_params(key, cin, cout, projection):
    ks = jax.random.split(key, 9)
    p = {
        "w1": 0.1 * jax.random.normal(ks[0], (cout, cin, 3, 3), jnp.float32),
        "g1": 1.0 + 0.1 * jax.random.normal(ks[1], (1, cout), jnp.float32),
        "b1": 0.1 * jax.random.normal(ks[2], (1, cout), jnp.float32),
        "w2": 0.1 * jax.random.normal(ks[3], (cout, cout, 3, 3), jnp.float32),
        "g2": 1.0 + 0.1 * jax.random.normal(ks[4], (1, cout), jnp.float32),
        "b2": 0.1 * jax.random.normal(ks[5], (1, cout), jnp.float32),
    }
    if projection:
        p["wsc"] = 0.1 * jax.random.normal(ks[6], (cout, cin, 1, 1), jnp.float32)
        p["gsc"] = 1.0 + 0.1 * jax.random.normal(ks[7], (1, cout), jnp.float32)
        p["bsc"] = 0.1 * jax.random.normal(ks[8], (1, cout), jnp.float32)
    return p


if __name__ == "__main__":
    fwd = jax.jit(basic_block_forward, static_argnums=2)
    key = jax.random.PRNGKey(0)
    k_a, k_b, k_xa, k_xb = jax.random.split(key, 4)

    # Case A: projection shortcut (stride=2, channel change)
    N, Cin, Cout, H, W, stride = 2, 4, 8, 16, 16, 2
    params_a = _make_params(k_a, Cin, Cout, projection=True)
    x_a = jax.random.normal(k_xa, (N, Cin, H, W), jnp.float32)
    out_a = jax.block_until_ready(fwd(x_a, params_a, stride))
    ref_a = jax.block_until_ready(basic_block_reference(x_a, params_a, stride))
    assert out_a.shape == (N, Cout, H // stride, W // stride), out_a.shape
    assert jnp.allclose(out_a, ref_a, rtol=5e-2, atol=1e-1), \
        float(jnp.max(jnp.abs(out_a - ref_a)))

    # Case B: identity shortcut (stride=1, same channels)
    N, C, H, W = 2, 8, 8, 8
    params_b = _make_params(k_b, C, C, projection=False)
    x_b = jax.random.normal(k_xb, (N, C, H, W), jnp.float32)
    out_b = jax.block_until_ready(fwd(x_b, params_b, 1))
    ref_b = jax.block_until_ready(basic_block_reference(x_b, params_b, 1))
    assert out_b.shape == (N, C, H, W), out_b.shape
    assert jnp.allclose(out_b, ref_b, rtol=5e-2, atol=1e-1), \
        float(jnp.max(jnp.abs(out_b - ref_b)))

    print("KERNEL_OK")
</pallas_src>

<mosaic_0001>
module attributes {stable_mosaic.version = 11 : i64} {
  func.func @_bn_apply_kernel(%arg0: i32, %arg1: memref<128x128xf32, #tpu.memory_space<vmem>>, %arg2: memref<1x128xf32, #tpu.memory_space<vmem>>, %arg3: memref<1x128xf32, #tpu.memory_space<vmem>>, %arg4: memref<128x128xbf16, #tpu.memory_space<vmem>>) attributes {dimension_semantics = [#tpu.dimension_semantics<parallel>], iteration_bounds = array<i64: 1>, scalar_prefetch = 0 : i64, scratch_operands = 0 : i64, tpu.core_type = #tpu.core_type<tc>, window_params = [{transform_indices = @transform_0, window_bounds = array<i64: 128, 128>}, {pipeline_mode = #tpu.pipeline_mode<synchronous>, transform_indices = @transform_1, window_bounds = array<i64: 1, 128>}, {pipeline_mode = #tpu.pipeline_mode<synchronous>, transform_indices = @transform_2, window_bounds = array<i64: 1, 128>}, {transform_indices = @transform_3, window_bounds = array<i64: 128, 128>}]} {
    %c0 = arith.constant 0 : index
    %c0_0 = arith.constant 0 : index
    %0 = vector.load %arg1[%c0, %c0_0] : memref<128x128xf32, #tpu.memory_space<vmem>>, vector<128x128xf32>
    %c0_1 = arith.constant 0 : index
    %c0_2 = arith.constant 0 : index
    %1 = vector.load %arg2[%c0_1, %c0_2] : memref<1x128xf32, #tpu.memory_space<vmem>>, vector<1x128xf32>
    %2 = vector.broadcast %1 : vector<1x128xf32> to vector<128x128xf32>
    %3 = arith.mulf %0, %2 : vector<128x128xf32>
    %c0_3 = arith.constant 0 : index
    %c0_4 = arith.constant 0 : index
    %4 = vector.load %arg3[%c0_3, %c0_4] : memref<1x128xf32, #tpu.memory_space<vmem>>, vector<1x128xf32>
    %5 = vector.broadcast %4 : vector<1x128xf32> to vector<128x128xf32>
    %6 = arith.addf %3, %5 : vector<128x128xf32>
    %cst = arith.constant 0.000000e+00 : f32
    %7 = vector.broadcast %cst : f32 to vector<128x128xf32>
    %8 = arith.maximumf %6, %7 : vector<128x128xf32>
    %9 = arith.truncf %8 : vector<128x128xf32> to vector<128x128xbf16>
    %c0_5 = arith.constant 0 : index
    %c0_6 = arith.constant 0 : index
    %10 = vector.load %arg4[%c0_5, %c0_6] : memref<128x128xbf16, #tpu.memory_space<vmem>>, vector<128x128xbf16>
    tpu.vector_store %arg4[%c0_5, %c0_6], %9 {strides = array<i32>} : memref<128x128xbf16, #tpu.memory_space<vmem>>, vector<128x128xbf16>,
    return
  }
  func.func @transform_0(%arg0: i32) -> (i32, i32) {
    %c0_i32 = arith.constant 0 : i32
    %c0_i32_0 = arith.constant 0 : i32
    return %arg0, %c0_i32 : i32, i32
  }
  func.func @transform_1(%arg0: i32) -> (i32, i32) {
    %c0_i32 = arith.constant 0 : i32
    %c0_i32_0 = arith.constant 0 : i32
    %c0_i32_1 = arith.constant 0 : i32
    return %c0_i32, %c0_i32_0 : i32, i32
  }
  func.func @transform_2(%arg0: i32) -> (i32, i32) {
    %c0_i32 = arith.constant 0 : i32
    %c0_i32_0 = arith.constant 0 : i32
    %c0_i32_1 = arith.constant 0 : i32
    return %c0_i32, %c0_i32_0 : i32, i32
  }
  func.func @transform_3(%arg0: i32) -> (i32, i32) {
    %c0_i32 = arith.constant 0 : i32
    %c0_i32_0 = arith.constant 0 : i32
    return %arg0, %c0_i32 : i32, i32
  }
}

module attributes {stable_mosaic.version = 11 : i64} {
  func.func @_matmul_stats_kernel(%arg0: i32, %arg1: memref<128x36xbf16, #tpu.memory_space<vmem>>, %arg2: memref<36x128xbf16, #tpu.memory_space<vmem>>, %arg3: memref<128x128xf32, #tpu.memory_space<vmem>>, %arg4: memref<8x128xf32, #tpu.memory_space<vmem>>) attributes {dimension_semantics = [#tpu.dimension_semantics<parallel>], iteration_bounds = array<i64: 1>, scalar_prefetch = 0 : i64, scratch_operands = 0 : i64, tpu.core_type = #tpu.core_type<tc>, window_params = [{transform_indices = @transform_0, window_bounds = array<i64: 128, 36>}, {pipeline_mode = #tpu.pipeline_mode<synchronous>, transform_indices = @transform_1, window_bounds = array<i64: 36, 128>}, {transform_indices = @transform_2, window_bounds = array<i64: 128, 128>}, {transform_indices = @transform_3, window_bounds = array<i64: 8, 128>}]} {
    %c0 = arith.constant 0 : index
    %c0_0 = arith.constant 0 : index
    %0 = vector.load %arg1[%c0, %c0_0] : memref<128x36xbf16, #tpu.memory_space<vmem>>, vector<128x36xbf16>
    %c0_1 = arith.constant 0 : index
    %c0_2 = arith.constant 0 : index
    %1 = vector.load %arg2[%c0_1, %c0_2] : memref<36x128xbf16, #tpu.memory_space<vmem>>, vector<36x128xbf16>
    %cst = arith.constant dense<0.000000e+00> : vector<128x128xf32>
    %2 = tpu.matmul %0, %1, %cst {dimension_numbers = #tpu.dot_dimension_numbers<[1], [0], [0], [1], [0, 0, 1, 1], [], []>} : vector<128x36xbf16>, vector<36x128xbf16>, vector<128x128xf32> -> vector<128x128xf32>
    %c0_3 = arith.constant 0 : index
    %c0_4 = arith.constant 0 : index
    %3 = vector.load %arg3[%c0_3, %c0_4] : memref<128x128xf32, #tpu.memory_space<vmem>>, vector<128x128xf32>
    tpu.vector_store %arg3[%c0_3, %c0_4], %2 {strides = array<i32>} : memref<128x128xf32, #tpu.memory_space<vmem>>, vector<128x128xf32>,
    %cst_5 = arith.constant dense<0.000000e+00> : vector<128xf32>
    %4 = vector.multi_reduction <add>, %2, %cst_5 [0] : vector<128x128xf32> to vector<128xf32>
    %5 = vector.shape_cast %4 : vector<128xf32> to vector<1x128xf32>
    %6 = arith.mulf %2, %2 : vector<128x128xf32>
    %cst_6 = arith.constant dense<0.000000e+00> : vector<128xf32>
    %7 = vector.multi_reduction <add>, %6, %cst_6 [0] : vector<128x128xf32> to vector<128xf32>
    %8 = vector.shape_cast %7 : vector<128xf32> to vector<1x128xf32>
    %cst_7 = arith.constant 0.000000e+00 : f32
    %9 = vector.broadcast %cst_7 : f32 to vector<6x128xf32>
    %10 = tpu.concatenate %5, %8, %9 in 0 : vector<1x128xf32>, vector<1x128xf32>, vector<6x128xf32> -> vector<8x128xf32>
    %c0_8 = arith.constant 0 : index
    %c0_9 = arith.constant 0 : index
    %11 = vector.load %arg4[%c0_8, %c0_9] : memref<8x128xf32, #tpu.memory_space<vmem>>, vector<8x128xf32>
    tpu.vector_store %arg4[%c0_8, %c0_9], %10 {strides = array<i32>} : memref<8x128xf32, #tpu.memory_space<vmem>>, vector<8x128xf32>,
    return
  }
  func.func @transform_0(%arg0: i32) -> (i32, i32) {
    %c0_i32 = arith.constant 0 : i32
    %c0_i32_0 = arith.constant 0 : i32
    return %arg0, %c0_i32 : i32, i32
  }
  func.func @transform_1(%arg0: i32) -> (i32, i32) {
    %c0_i32 = arith.constant 0 : i32
    %c0_i32_0 = arith.constant 0 : i32
    %c0_i32_1 = arith.constant 0 : i32
    return %c0_i32, %c0_i32_0 : i32, i32
  }
  func.func @transform_2(%arg0: i32) -> (i32, i32) {
    %c0_i32 = arith.constant 0 : i32
    %c0_i32_0 = arith.constant 0 : i32
    return %arg0, %c0_i32 : i32, i32
  }
  func.func @transform_3(%arg0: i32) -> (i32, i32) {
    %c0_i32 = arith.constant 0 : i32
    %c0_i32_0 = arith.constant 0 : i32
    return %arg0, %c0_i32 : i32, i32
  }
}

module attributes {stable_mosaic.version = 11 : i64} {
  func.func @_matmul_stats_kernel(%arg0: i32, %arg1: memref<128x4xbf16, #tpu.memory_space<vmem>>, %arg2: memref<4x128xbf16, #tpu.memory_space<vmem>>, %arg3: memref<128x128xf32, #tpu.memory_space<vmem>>, %arg4: memref<8x128xf32, #tpu.memory_space<vmem>>) attributes {dimension_semantics = [#tpu.dimension_semantics<parallel>], iteration_bounds = array<i64: 1>, scalar_prefetch = 0 : i64, scratch_operands = 0 : i64, tpu.core_type = #tpu.core_type<tc>, window_params = [{transform_indices = @transform_0, window_bounds = array<i64: 128, 4>}, {pipeline_mode = #tpu.pipeline_mode<synchronous>, transform_indices = @transform_1, window_bounds = array<i64: 4, 128>}, {transform_indices = @transform_2, window_bounds = array<i64: 128, 128>}, {transform_indices = @transform_3, window_bounds = array<i64: 8, 128>}]} {
    %c0 = arith.constant 0 : index
    %c0_0 = arith.constant 0 : index
    %0 = vector.load %arg1[%c0, %c0_0] : memref<128x4xbf16, #tpu.memory_space<vmem>>, vector<128x4xbf16>
    %c0_1 = arith.constant 0 : index
    %c0_2 = arith.constant 0 : index
    %1 = vector.load %arg2[%c0_1, %c0_2] : memref<4x128xbf16, #tpu.memory_space<vmem>>, vector<4x128xbf16>
    %cst = arith.constant dense<0.000000e+00> : vector<128x128xf32>
    %2 = tpu.matmul %0, %1, %cst {dimension_numbers = #tpu.dot_dimension_numbers<[1], [0], [0], [1], [0, 0, 1, 1], [], []>} : vector<128x4xbf16>, vector<4x128xbf16>, vector<128x128xf32> -> vector<128x128xf32>
    %c0_3 = arith.constant 0 : index
    %c0_4 = arith.constant 0 : index
    %3 = vector.load %arg3[%c0_3, %c0_4] : memref<128x128xf32, #tpu.memory_space<vmem>>, vector<128x128xf32>
    tpu.vector_store %arg3[%c0_3, %c0_4], %2 {strides = array<i32>} : memref<128x128xf32, #tpu.memory_space<vmem>>, vector<128x128xf32>,
    %cst_5 = arith.constant dense<0.000000e+00> : vector<128xf32>
    %4 = vector.multi_reduction <add>, %2, %cst_5 [0] : vector<128x128xf32> to vector<128xf32>
    %5 = vector.shape_cast %4 : vector<128xf32> to vector<1x128xf32>
    %6 = arith.mulf %2, %2 : vector<128x128xf32>
    %cst_6 = arith.constant dense<0.000000e+00> : vector<128xf32>
    %7 = vector.multi_reduction <add>, %6, %cst_6 [0] : vector<128x128xf32> to vector<128xf32>
    %8 = vector.shape_cast %7 : vector<128xf32> to vector<1x128xf32>
    %cst_7 = arith.constant 0.000000e+00 : f32
    %9 = vector.broadcast %cst_7 : f32 to vector<6x128xf32>
    %10 = tpu.concatenate %5, %8, %9 in 0 : vector<1x128xf32>, vector<1x128xf32>, vector<6x128xf32> -> vector<8x128xf32>
    %c0_8 = arith.constant 0 : index
    %c0_9 = arith.constant 0 : index
    %11 = vector.load %arg4[%c0_8, %c0_9] : memref<8x128xf32, #tpu.memory_space<vmem>>, vector<8x128xf32>
    tpu.vector_store %arg4[%c0_8, %c0_9], %10 {strides = array<i32>} : memref<8x128xf32, #tpu.memory_space<vmem>>, vector<8x128xf32>,
    return
  }
  func.func @transform_0(%arg0: i32) -> (i32, i32) {
    %c0_i32 = arith.constant 0 : i32
    %c0_i32_0 = arith.constant 0 : i32
    return %arg0, %c0_i32 : i32, i32
  }
  func.func @transform_1(%arg0: i32) -> (i32, i32) {
    %c0_i32 = arith.constant 0 : i32
    %c0_i32_0 = arith.constant 0 : i32
    %c0_i32_1 = arith.constant 0 : i32
    return %c0_i32, %c0_i32_0 : i32, i32
  }
  func.func @transform_2(%arg0: i32) -> (i32, i32) {
    %c0_i32 = arith.constant 0 : i32
    %c0_i32_0 = arith.constant 0 : i32
    return %arg0, %c0_i32 : i32, i32
  }
  func.func @transform_3(%arg0: i32) -> (i32, i32) {
    %c0_i32 = arith.constant 0 : i32
    %c0_i32_0 = arith.constant 0 : i32
    return %arg0, %c0_i32 : i32, i32
  }
}

module attributes {stable_mosaic.version = 11 : i64} {
  func.func @_matmul_stats_kernel(%arg0: i32, %arg1: memref<128x72xbf16, #tpu.memory_space<vmem>>, %arg2: memref<72x128xbf16, #tpu.memory_space<vmem>>, %arg3: memref<128x128xf32, #tpu.memory_space<vmem>>, %arg4: memref<8x128xf32, #tpu.memory_space<vmem>>) attributes {dimension_semantics = [#tpu.dimension_semantics<parallel>], iteration_bounds = array<i64: 1>, scalar_prefetch = 0 : i64, scratch_operands = 0 : i64, tpu.core_type = #tpu.core_type<tc>, window_params = [{transform_indices = @transform_0, window_bounds = array<i64: 128, 72>}, {pipeline_mode = #tpu.pipeline_mode<synchronous>, transform_indices = @transform_1, window_bounds = array<i64: 72, 128>}, {transform_indices = @transform_2, window_bounds = array<i64: 128, 128>}, {transform_indices = @transform_3, window_bounds = array<i64: 8, 128>}]} {
    %c0 = arith.constant 0 : index
    %c0_0 = arith.constant 0 : index
    %0 = vector.load %arg1[%c0, %c0_0] : memref<128x72xbf16, #tpu.memory_space<vmem>>, vector<128x72xbf16>
    %c0_1 = arith.constant 0 : index
    %c0_2 = arith.constant 0 : index
    %1 = vector.load %arg2[%c0_1, %c0_2] : memref<72x128xbf16, #tpu.memory_space<vmem>>, vector<72x128xbf16>
    %cst = arith.constant dense<0.000000e+00> : vector<128x128xf32>
    %2 = tpu.matmul %0, %1, %cst {dimension_numbers = #tpu.dot_dimension_numbers<[1], [0], [0], [1], [0, 0, 1, 1], [], []>} : vector<128x72xbf16>, vector<72x128xbf16>, vector<128x128xf32> -> vector<128x128xf32>
    %c0_3 = arith.constant 0 : index
    %c0_4 = arith.constant 0 : index
    %3 = vector.load %arg3[%c0_3, %c0_4] : memref<128x128xf32, #tpu.memory_space<vmem>>, vector<128x128xf32>
    tpu.vector_store %arg3[%c0_3, %c0_4], %2 {strides = array<i32>} : memref<128x128xf32, #tpu.memory_space<vmem>>, vector<128x128xf32>,
    %cst_5 = arith.constant dense<0.000000e+00> : vector<128xf32>
    %4 = vector.multi_reduction <add>, %2, %cst_5 [0] : vector<128x128xf32> to vector<128xf32>
    %5 = vector.shape_cast %4 : vector<128xf32> to vector<1x128xf32>
    %6 = arith.mulf %2, %2 : vector<128x128xf32>
    %cst_6 = arith.constant dense<0.000000e+00> : vector<128xf32>
    %7 = vector.multi_reduction <add>, %6, %cst_6 [0] : vector<128x128xf32> to vector<128xf32>
    %8 = vector.shape_cast %7 : vector<128xf32> to vector<1x128xf32>
    %cst_7 = arith.constant 0.000000e+00 : f32
    %9 = vector.broadcast %cst_7 : f32 to vector<6x128xf32>
    %10 = tpu.concatenate %5, %8, %9 in 0 : vector<1x128xf32>, vector<1x128xf32>, vector<6x128xf32> -> vector<8x128xf32>
    %c0_8 = arith.constant 0 : index
    %c0_9 = arith.constant 0 : index
    %11 = vector.load %arg4[%c0_8, %c0_9] : memref<8x128xf32, #tpu.memory_space<vmem>>, vector<8x128xf32>
    tpu.vector_store %arg4[%c0_8, %c0_9], %10 {strides = array<i32>} : memref<8x128xf32, #tpu.memory_space<vmem>>, vector<8x128xf32>,
    return
  }
  func.func @transform_0(%arg0: i32) -> (i32, i32) {
    %c0_i32 = arith.constant 0 : i32
    %c0_i32_0 = arith.constant 0 : i32
    return %arg0, %c0_i32 : i32, i32
  }
  func.func @transform_1(%arg0: i32) -> (i32, i32) {
    %c0_i32 = arith.constant 0 : i32
    %c0_i32_0 = arith.constant 0 : i32
    %c0_i32_1 = arith.constant 0 : i32
    return %c0_i32, %c0_i32_0 : i32, i32
  }
  func.func @transform_2(%arg0: i32) -> (i32, i32) {
    %c0_i32 = arith.constant 0 : i32
    %c0_i32_0 = arith.constant 0 : i32
    return %arg0, %c0_i32 : i32, i32
  }
  func.func @transform_3(%arg0: i32) -> (i32, i32) {
    %c0_i32 = arith.constant 0 : i32
    %c0_i32_0 = arith.constant 0 : i32
    return %arg0, %c0_i32 : i32, i32
  }
}

module attributes {stable_mosaic.version = 11 : i64} {
  func.func @_bn_apply_res_kernel(%arg0: i32, %arg1: memref<128x128xf32, #tpu.memory_space<vmem>>, %arg2: memref<1x128xf32, #tpu.memory_space<vmem>>, %arg3: memref<1x128xf32, #tpu.memory_space<vmem>>, %arg4: memref<128x128xf32, #tpu.memory_space<vmem>>, %arg5: memref<1x128xf32, #tpu.memory_space<vmem>>, %arg6: memref<1x128xf32, #tpu.memory_space<vmem>>, %arg7: memref<128x128xf32, #tpu.memory_space<vmem>>) attributes {dimension_semantics = [#tpu.dimension_semantics<parallel>], iteration_bounds = array<i64: 1>, scalar_prefetch = 0 : i64, scratch_operands = 0 : i64, tpu.core_type = #tpu.core_type<tc>, window_params = [{transform_indices = @transform_0, window_bounds = array<i64: 128, 128>}, {pipeline_mode = #tpu.pipeline_mode<synchronous>, transform_indices = @transform_1, window_bounds = array<i64: 1, 128>}, {pipeline_mode = #tpu.pipeline_mode<synchronous>, transform_indices = @transform_2, window_bounds = array<i64: 1, 128>}, {transform_indices = @transform_3, window_bounds = array<i64: 128, 128>}, {pipeline_mode = #tpu.pipeline_mode<synchronous>, transform_indices = @transform_4, window_bounds = array<i64: 1, 128>}, {pipeline_mode = #tpu.pipeline_mode<synchronous>, transform_indices = @transform_5, window_bounds = array<i64: 1, 128>}, {transform_indices = @transform_6, window_bounds = array<i64: 128, 128>}]} {
    %c0 = arith.constant 0 : index
    %c0_0 = arith.constant 0 : index
    %0 = vector.load %arg1[%c0, %c0_0] : memref<128x128xf32, #tpu.memory_space<vmem>>, vector<128x128xf32>
    %c0_1 = arith.constant 0 : index
    %c0_2 = arith.constant 0 : index
    %1 = vector.load %arg2[%c0_1, %c0_2] : memref<1x128xf32, #tpu.memory_space<vmem>>, vector<1x128xf32>
    %2 = vector.broadcast %1 : vector<1x128xf32> to vector<128x128xf32>
    %3 = arith.mulf %0, %2 : vector<128x128xf32>
    %c0_3 = arith.constant 0 : index
    %c0_4 = arith.constant 0 : index
    %4 = vector.load %arg3[%c0_3, %c0_4] : memref<1x128xf32, #tpu.memory_space<vmem>>, vector<1x128xf32>
    %5 = vector.broadcast %4 : vector<1x128xf32> to vector<128x128xf32>
    %6 = arith.addf %3, %5 : vector<128x128xf32>
    %c0_5 = arith.constant 0 : index
    %c0_6 = arith.constant 0 : index
    %7 = vector.load %arg4[%c0_5, %c0_6] : memref<128x128xf32, #tpu.memory_space<vmem>>, vector<128x128xf32>
    %c0_7 = arith.constant 0 : index
    %c0_8 = arith.constant 0 : index
    %8 = vector.load %arg5[%c0_7, %c0_8] : memref<1x128xf32, #tpu.memory_space<vmem>>, vector<1x128xf32>
    %9 = vector.broadcast %8 : vector<1x128xf32> to vector<128x128xf32>
    %10 = arith.mulf %7, %9 : vector<128x128xf32>
    %11 = arith.addf %6, %10 : vector<128x128xf32>
    %c0_9 = arith.constant 0 : index
    %c0_10 = arith.constant 0 : index
    %12 = vector.load %arg6[%c0_9, %c0_10] : memref<1x128xf32, #tpu.memory_space<vmem>>, vector<1x128xf32>
    %13 = vector.broadcast %12 : vector<1x128xf32> to vector<128x128xf32>
    %14 = arith.addf %11, %13 : vector<128x128xf32>
    %cst = arith.constant 0.000000e+00 : f32
    %15 = vector.broadcast %cst : f32 to vector<128x128xf32>
    %16 = arith.maximumf %14, %15 : vector<128x128xf32>
    %c0_11 = arith.constant 0 : index
    %c0_12 = arith.constant 0 : index
    %17 = vector.load %arg7[%c0_11, %c0_12] : memref<128x128xf32, #tpu.memory_space<vmem>>, vector<128x128xf32>
    tpu.vector_store %arg7[%c0_11, %c0_12], %16 {strides = array<i32>} : memref<128x128xf32, #tpu.memory_space<vmem>>, vector<128x128xf32>,
    return
  }
  func.func @transform_0(%arg0: i32) -> (i32, i32) {
    %c0_i32 = arith.constant 0 : i32
    %c0_i32_0 = arith.constant 0 : i32
    return %arg0, %c0_i32 : i32, i32
  }
  func.func @transform_1(%arg0: i32) -> (i32, i32) {
    %c0_i32 = arith.constant 0 : i32
    %c0_i32_0 = arith.constant 0 : i32
    %c0_i32_1 = arith.constant 0 : i32
    return %c0_i32, %c0_i32_0 : i32, i32
  }
  func.func @transform_2(%arg0: i32) -> (i32, i32) {
    %c0_i32 = arith.constant 0 : i32
    %c0_i32_0 = arith.constant 0 : i32
    %c0_i32_1 = arith.constant 0 : i32
    return %c0_i32, %c0_i32_0 : i32, i32
  }
  func.func @transform_3(%arg0: i32) -> (i32, i32) {
    %c0_i32 = arith.constant 0 : i32
    %c0_i32_0 = arith.constant 0 : i32
    return %arg0, %c0_i32 : i32, i32
  }
  func.func @transform_4(%arg0: i32) -> (i32, i32) {
    %c0_i32 = arith.constant 0 : i32
    %c0_i32_0 = arith.constant 0 : i32
    %c0_i32_1 = arith.constant 0 : i32
    return %c0_i32, %c0_i32_0 : i32, i32
  }
  func.func @transform_5(%arg0: i32) -> (i32, i32) {
    %c0_i32 = arith.constant 0 : i32
    %c0_i32_0 = arith.constant 0 : i32
    %c0_i32_1 = arith.constant 0 : i32
    return %c0_i32, %c0_i32_0 : i32, i32
  }
  func.func @transform_6(%arg0: i32) -> (i32, i32) {
    %c0_i32 = arith.constant 0 : i32
    %c0_i32_0 = arith.constant 0 : i32
    return %arg0, %c0_i32 : i32, i32
  }
}

</mosaic_0001>

<llo_original>
// kernel: basic_block_forward.6
$region0: #{basic_block_forward.6}
  #allocation0 [shape = 'u32[]', space=smem, size = 0x4, offset = 0x4, fixed_abs, tag = 'smem constant byte address 0x4 - core index']
  #allocation1 [shape = 'u32[72,128]{1,0:T(1,128)}', space=vmem, size = 0x9000, scoped, tag = 'internal scratch']
  %s0 = inlined_call_operand.vmem [shape: f32[128,128], index: 0, kind: input, shape index: {}]
  %s1 = inlined_call_operand.vmem [shape: f32[1,128], index: 1, kind: input, shape index: {}]
  %s2 = inlined_call_operand.vmem [shape: f32[1,128], index: 2, kind: input, shape index: {}]
  %s3 = inlined_call_operand.vmem [shape: bf16[128,128], index: 3, kind: output, shape index: {}]
  %s4 = sld [smem:[#allocation0]]
  $region22: #{basic_block_forward.6} parent=0
    _
  %s6 = ssub.s32 1, %s4
  %s7 = scalar_select 0, %s6, %s4
  // Predicated region
  $region2: #{basic_block_forward.6} parent=0 // pred_check
    _
  $region3: #{basic_block_forward.6} parent=0 // pred_check_branch
    %9 = sbr.rel (0) target = $region5
  $region4: #{basic_block_forward.6} parent=0 // pred_region
    _
  $region5: #{basic_block_forward.6} parent=0 // pred_fallthru
    _
  // Predicated region
  $region6: #{basic_block_forward.6} parent=0 // pred_check
    _
  $region7: #{basic_block_forward.6} parent=0 // pred_check_branch
    %11 = sbr.rel (0) target = $region9
  $region8: #{basic_block_forward.6} parent=0 // pred_region
    _
  $region9: #{basic_block_forward.6} parent=0 // pred_fallthru
    _
  // Predicated region
  $region10: #{basic_block_forward.6} parent=0 // pred_check
    _
  $region11: #{basic_block_forward.6} parent=0 // pred_check_branch
    %13 = sbr.rel (0) target = $region13
  $region12: #{basic_block_forward.6} parent=0 // pred_region
    _
  $region13: #{basic_block_forward.6} parent=0 // pred_fallthru
    _
  %v14 = vld [vmem:[%s0] sm:$0xff]
  %v15 = vld [vmem:[%s0 + $0x8] sm:$0xff]
  %v16 = vld [vmem:[%s0 + $0x10] sm:$0xff]
  %v17 = vld [vmem:[%s0 + $0x18] sm:$0xff]
  %v18 = vld [vmem:[%s0 + $0x20] sm:$0xff]
  %v19 = vld [vmem:[%s0 + $0x28] sm:$0xff]
  %v20 = vld [vmem:[%s0 + $0x30] sm:$0xff]
  %v21 = vld [vmem:[%s0 + $0x38] sm:$0xff]
  %v22 = vld [vmem:[%s0 + $0x40] sm:$0xff]
  %v23 = vld [vmem:[%s0 + $0x48] sm:$0xff]
  %v24 = vld [vmem:[%s0 + $0x50] sm:$0xff]
  %v25 = vld [vmem:[%s0 + $0x58] sm:$0xff]
  %v26 = vld [vmem:[%s0 + $0x60] sm:$0xff]
  %v27 = vld [vmem:[%s0 + $0x68] sm:$0xff]
  %v28 = vld [vmem:[%s0 + $0x70] sm:$0xff]
  %v29 = vld [vmem:[%s0 + $0x78] sm:$0xff]
  %v30 = vld [vmem:[%s1] sm:$0x1]
  %v32 = vperm.slane %v30, 0
  %v34 = vmul.f32 %v14, %v32
  %v35 = vmul.f32 %v15, %v32
  %v36 = vmul.f32 %v16, %v32
  %v37 = vmul.f32 %v17, %v32
  %v38 = vmul.f32 %v18, %v32
  %v39 = vmul.f32 %v19, %v32
  %v40 = vmul.f32 %v20, %v32
  %v41 = vmul.f32 %v21, %v32
  %v42 = vmul.f32 %v22, %v32
  %v43 = vmul.f32 %v23, %v32
  %v44 = vmul.f32 %v24, %v32
  %v45 = vmul.f32 %v25, %v32
  %v46 = vmul.f32 %v26, %v32
  %v47 = vmul.f32 %v27, %v32
  %v48 = vmul.f32 %v28, %v32
  %v49 = vmul.f32 %v29, %v32
  %v50 = vld [vmem:[%s2] sm:$0x1]
  %v52 = vperm.slane %v50, 0
  %v54 = vadd.f32 %v34, %v52
  %v55 = vadd.f32 %v35, %v52
  %v56 = vadd.f32 %v36, %v52
  %v57 = vadd.f32 %v37, %v52
  %v58 = vadd.f32 %v38, %v52
  %v59 = vadd.f32 %v39, %v52
  %v60 = vadd.f32 %v40, %v52
  %v61 = vadd.f32 %v41, %v52
  %v62 = vadd.f32 %v42, %v52
  %v63 = vadd.f32 %v43, %v52
  %v64 = vadd.f32 %v44, %v52
  %v65 = vadd.f32 %v45, %v52
  %v66 = vadd.f32 %v46, %v52
  %v67 = vadd.f32 %v47, %v52
  %v68 = vadd.f32 %v48, %v52
  %v69 = vadd.f32 %v49, %v52
  %v70 = vmax.f32 %v54, 0.0
  %v71 = vmax.f32 %v55, 0.0
  %v72 = vmax.f32 %v56, 0.0
  %v73 = vmax.f32 %v57, 0.0
  %v74 = vmax.f32 %v58, 0.0
  %v75 = vmax.f32 %v59, 0.0
  %v76 = vmax.f32 %v60, 0.0
  %v77 = vmax.f32 %v61, 0.0
  %v78 = vmax.f32 %v62, 0.0
  %v79 = vmax.f32 %v63, 0.0
  %v80 = vmax.f32 %v64, 0.0
  %v81 = vmax.f32 %v65, 0.0
  %v82 = vmax.f32 %v66, 0.0
  %v83 = vmax.f32 %v67, 0.0
  %v84 = vmax.f32 %v68, 0.0
  %v85 = vmax.f32 %v69, 0.0
  %v86 = vpack.c.bf16 %v70, %v70
  %v87 = vpack.c.bf16 %v71, %v71
  %v88 = vpack.c.bf16 %v72, %v72
  %v89 = vpack.c.bf16 %v73, %v73
  %v90 = vpack.c.bf16 %v74, %v74
  %v91 = vpack.c.bf16 %v75, %v75
  %v92 = vpack.c.bf16 %v76, %v76
  %v93 = vpack.c.bf16 %v77, %v77
  %v94 = vpack.c.bf16 %v78, %v78
  %v95 = vpack.c.bf16 %v79, %v79
  %v96 = vpack.c.bf16 %v80, %v80
  %v97 = vpack.c.bf16 %v81, %v81
  %v98 = vpack.c.bf16 %v82, %v82
  %v99 = vpack.c.bf16 %v83, %v83
  %v100 = vpack.c.bf16 %v84, %v84
  %v101 = vpack.c.bf16 %v85, %v85
  %102 = vst [vmem:[%s3] sm:$0xf] %v86
  %103 = vst [vmem:[%s3 + $0x4] sm:$0xf] %v87
  %104 = vst [vmem:[%s3 + $0x8] sm:$0xf] %v88
  %105 = vst [vmem:[%s3 + $0xc] sm:$0xf] %v89
  %106 = vst [vmem:[%s3 + $0x10] sm:$0xf] %v90
  %107 = vst [vmem:[%s3 + $0x14] sm:$0xf] %v91
  %108 = vst [vmem:[%s3 + $0x18] sm:$0xf] %v92
  %109 = vst [vmem:[%s3 + $0x1c] sm:$0xf] %v93
  %110 = vst [vmem:[%s3 + $0x20] sm:$0xf] %v94
  %111 = vst [vmem:[%s3 + $0x24] sm:$0xf] %v95
  %112 = vst [vmem:[%s3 + $0x28] sm:$0xf] %v96
  %113 = vst [vmem:[%s3 + $0x2c] sm:$0xf] %v97
  %114 = vst [vmem:[%s3 + $0x30] sm:$0xf] %v98
  %115 = vst [vmem:[%s3 + $0x34] sm:$0xf] %v99
  %116 = vst [vmem:[%s3 + $0x38] sm:$0xf] %v100
  %117 = vst [vmem:[%s3 + $0x3c] sm:$0xf] %v101
  // Predicated region
  $region14: #{basic_block_forward.6} parent=0 // pred_check
    _
  $region15: #{basic_block_forward.6} parent=0 // pred_check_branch
    %119 = sbr.rel (0) target = $region17
  $region16: #{basic_block_forward.6} parent=0 // pred_region
    _
  $region17: #{basic_block_forward.6} parent=0 // pred_fallthru
    _
  // Predicated region
  $region18: #{basic_block_forward.6} parent=0 // pred_check
    _
  $region19: #{basic_block_forward.6} parent=0 // pred_check_branch
    %121 = sbr.rel (0) target = $region21
  $region20: #{basic_block_forward.6} parent=0 // pred_region
    _
  $region21: #{basic_block_forward.6} parent=0 // pred_fallthru
    _

// kernel: basic_block_forward.5
$region0: #{basic_block_forward.5}
  #allocation0 [shape = 'u32[]', space=smem, size = 0x4, offset = 0x4, fixed_abs, tag = 'smem constant byte address 0x4 - core index']
  #allocation1 [shape = 'u32[72,128]{1,0:T(1,128)}', space=vmem, size = 0x9000, scoped, tag = 'internal scratch']
  %s0 = inlined_call_operand.vmem [shape: bf16[128,36], index: 0, kind: input, shape index: {}]
  %s1 = inlined_call_operand.vmem [shape: bf16[36,128], index: 1, kind: input, shape index: {}]
  %s2 = inlined_call_operand.vmem [shape: f32[128,128], index: 2, kind: output, shape index: {0}]
  %s3 = inlined_call_operand.vmem [shape: f32[8,128], index: 3, kind: output, shape index: {1}]
  %4 = xla_tuple %s2, %s3
  %s5 = sld [smem:[#allocation0]]
  $region26: #{basic_block_forward.5} parent=0
    _
  %s7 = ssub.s32 1, %s5
  %s8 = scalar_select 0, %s7, %s5
  // Predicated region
  $region2: #{basic_block_forward.5} parent=0 // pred_check
    _
  $region3: #{basic_block_forward.5} parent=0 // pred_check_branch
    %10 = sbr.rel (0) target = $region5
  $region4: #{basic_block_forward.5} parent=0 // pred_region
    _
  $region5: #{basic_block_forward.5} parent=0 // pred_fallthru
    _
  // Predicated region
  $region6: #{basic_block_forward.5} parent=0 // pred_check
    _
  $region7: #{basic_block_forward.5} parent=0 // pred_check_branch
    %12 = sbr.rel (0) target = $region9
  $region8: #{basic_block_forward.5} parent=0 // pred_region
    _
  $region9: #{basic_block_forward.5} parent=0 // pred_fallthru
    _
  %v14 = vld [vmem:[%s0] sm:$0xf]
  %v15 = vld [vmem:[%s0 + $0x4] sm:$0xf]
  %v16 = vld [vmem:[%s0 + $0x8] sm:$0xf]
  %v17 = vld [vmem:[%s0 + $0xc] sm:$0xf]
  %v18 = vld [vmem:[%s0 + $0x10] sm:$0xf]
  %v19 = vld [vmem:[%s0 + $0x14] sm:$0xf]
  %v20 = vld [vmem:[%s0 + $0x18] sm:$0xf]
  %v21 = vld [vmem:[%s0 + $0x1c] sm:$0xf]
  %v22 = vld [vmem:[%s0 + $0x20] sm:$0xf]
  %v23 = vld [vmem:[%s0 + $0x24] sm:$0xf]
  %v24 = vld [vmem:[%s0 + $0x28] sm:$0xf]
  %v25 = vld [vmem:[%s0 + $0x2c] sm:$0xf]
  %v26 = vld [vmem:[%s0 + $0x30] sm:$0xf]
  %v27 = vld [vmem:[%s0 + $0x34] sm:$0xf]
  %v28 = vld [vmem:[%s0 + $0x38] sm:$0xf]
  %v29 = vld [vmem:[%s0 + $0x3c] sm:$0xf]
  %v30 = vld [vmem:[%s1] sm:$0xf]
  %v31 = vld [vmem:[%s1 + $0x4] sm:$0xf]
  %v32 = vld [vmem:[%s1 + $0x8] sm:$0xf]
  %v33 = vld [vmem:[%s1 + $0xc] sm:$0xf]
  %v34 = vld [vmem:[%s1 + $0x10] sm:$0x3]
  %v51 = vunpack.c.l.b16 %v14
  %v52 = vunpack.c.l.b16 %v15
  %v53 = vunpack.c.l.b16 %v16
  %v54 = vunpack.c.l.b16 %v17
  %v55 = vunpack.c.l.b16 %v18
  %v56 = vunpack.c.l.b16 %v19
  %v57 = vunpack.c.l.b16 %v20
  %v58 = vunpack.c.l.b16 %v21
  %v59 = vunpack.c.l.b16 %v22
  %v60 = vunpack.c.l.b16 %v23
  %v61 = vunpack.c.l.b16 %v24
  %v62 = vunpack.c.l.b16 %v25
  %v63 = vunpack.c.l.b16 %v26
  %v64 = vunpack.c.l.b16 %v27
  %v65 = vunpack.c.l.b16 %v28
  %v66 = vunpack.c.l.b16 %v29
  %v67 = vpack.c.b16 %v52, %v51
  %v68 = vpack.c.b16 %v54, %v53
  %v69 = vpack.c.b16 %v56, %v55
  %v70 = vpack.c.b16 %v58, %v57
  %v71 = vpack.c.b16 %v60, %v59
  %v72 = vpack.c.b16 %v62, %v61
  %v73 = vpack.c.b16 %v64, %v63
  %v74 = vpack.c.b16 %v66, %v65
  %v80 = vunpack.c.l.b16 %v30
  %v81 = vunpack.c.l.b16 %v31
  %v82 = vunpack.c.l.b16 %v32
  %v83 = vunpack.c.l.b16 %v33
  %v84 = vunpack.c.l.b16 %v34
  %v85 = vpack.c.b16 %v81, %v80
  %v86 = vpack.c.b16 %v83, %v82
  %v87 = vpack.c.b16 %v84, %v84
  %vm90 = vcmask 293888
  %v92 = vsel %vm90, %v67, 0
  %v95 = vsel %vm90, %v68, 0
  %v98 = vsel %vm90, %v69, 0
  %v101 = vsel %vm90, %v70, 0
  %v104 = vsel %vm90, %v71, 0
  %v107 = vsel %vm90, %v72, 0
  %v110 = vsel %vm90, %v73, 0
  %v113 = vsel %vm90, %v74, 0
  %vm115 = vcmask 1041408
  %v117 = vsel %vm115, %v87, 0
  %119 = vmatpush.bf16.msra.mxu0 0
  %120 = vmatpush.bf16.msra.mxu0 0
  %121 = vmatpush.bf16.msra.mxu0 0
  %122 = vmatpush.bf16.msra.mxu0 0
  %123 = vmatpush.bf16.msra.mxu0 0
  %124 = vmatpush.bf16.msra.mxu0 %v117
  %125 = vmatpush.bf16.msra.mxu0 %v86
  %126 = vmatpush.bf16.msra.mxu0 %v85
  %127 = vmatmul.bf16.gmra.mxu0 %v92
  %v128 = vpop.f32.mrf.mxu0
  %v129 = vadd.f32 0.0, %v128
  %v130 = vpop.f32.mrf.mxu0
  %v131 = vadd.f32 0.0, %v130
  %132 = vmatmul.bf16.gmra.mxu0 %v95
  %v133 = vpop.f32.mrf.mxu0
  %v134 = vadd.f32 0.0, %v133
  %v135 = vpop.f32.mrf.mxu0
  %v136 = vadd.f32 0.0, %v135
  %137 = vmatmul.bf16.gmra.mxu0 %v98
  %v138 = vpop.f32.mrf.mxu0
  %v139 = vadd.f32 0.0, %v138
  %v140 = vpop.f32.mrf.mxu0
  %v141 = vadd.f32 0.0, %v140
  %142 = vmatmul.bf16.gmra.mxu0 %v101
  %v143 = vpop.f32.mrf.mxu0
  %v144 = vadd.f32 0.0, %v143
  %v145 = vpop.f32.mrf.mxu0
  %v146 = vadd.f32 0.0, %v145
  %147 = vmatmul.bf16.gmra.mxu0 %v104
  %v148 = vpop.f32.mrf.mxu0
  %v149 = vadd.f32 0.0, %v148
  %v150 = vpop.f32.mrf.mxu0
  %v151 = vadd.f32 0.0, %v150
  %152 = vmatmul.bf16.gmra.mxu0 %v107
  %v153 = vpop.f32.mrf.mxu0
  %v154 = vadd.f32 0.0, %v153
  %v155 = vpop.f32.mrf.mxu0
  %v156 = vadd.f32 0.0, %v155
  %157 = vmatmul.bf16.gmra.mxu0 %v110
  %v158 = vpop.f32.mrf.mxu0
  %v159 = vadd.f32 0.0, %v158
  %v160 = vpop.f32.mrf.mxu0
  %v161 = vadd.f32 0.0, %v160
  %162 = vmatmul.bf16.gmra.mxu0 %v113
  %v163 = vpop.f32.mrf.mxu0
  %v164 = vadd.f32 0.0, %v163
  %v165 = vpop.f32.mrf.mxu0
  %v166 = vadd.f32 0.0, %v165
  %167 = vdwg.mxu0
  %168 = vst [vmem:[%s2] sm:$0xff] %v129
  %169 = vst [vmem:[%s2 + $0x8] sm:$0xff] %v131
  %170 = vst [vmem:[%s2 + $0x10] sm:$0xff] %v134
  %171 = vst [vmem:[%s2 + $0x18] sm:$0xff] %v136
  %172 = vst [vmem:[%s2 + $0x20] sm:$0xff] %v139
  %173 = vst [vmem:[%s2 + $0x28] sm:$0xff] %v141
  %174 = vst [vmem:[%s2 + $0x30] sm:$0xff] %v144
  %175 = vst [vmem:[%s2 + $0x38] sm:$0xff] %v146
  %176 = vst [vmem:[%s2 + $0x40] sm:$0xff] %v149
  %177 = vst [vmem:[%s2 + $0x48] sm:$0xff] %v151
  %178 = vst [vmem:[%s2 + $0x50] sm:$0xff] %v154
  %179 = vst [vmem:[%s2 + $0x58] sm:$0xff] %v156
  %180 = vst [vmem:[%s2 + $0x60] sm:$0xff] %v159
  %181 = vst [vmem:[%s2 + $0x68] sm:$0xff] %v161
  %182 = vst [vmem:[%s2 + $0x70] sm:$0xff] %v164
  %183 = vst [vmem:[%s2 + $0x78] sm:$0xff] %v166
  %v184 = vadd.f32 %v129, %v131
  %v185 = vadd.f32 %v184, %v134
  %v186 = vadd.f32 %v185, %v136
  %v187 = vadd.f32 %v186, %v139
  %v188 = vadd.f32 %v187, %v141
  %v189 = vadd.f32 %v188, %v144
  %v190 = vadd.f32 %v189, %v146
  %v191 = vadd.f32 %v190, %v149
  %v192 = vadd.f32 %v191, %v151
  %v193 = vadd.f32 %v192, %v154
  %v194 = vadd.f32 %v193, %v156
  %v195 = vadd.f32 %v194, %v159
  %v196 = vadd.f32 %v195, %v161
  %v197 = vadd.f32 %v196, %v164
  %v198 = vadd.f32 %v197, %v166
  %v199 = vrot.slane %v198, 4
  %v200 = vadd.f32 %v198, %v199
  %v201 = vrot.slane %v200, 2
  %v202 = vadd.f32 %v200, %v201
  %v203 = vrot.slane %v202, 1
  %v204 = vadd.f32 %v202, %v203
  %v205 = vmul.f32 %v129, %v129
  %v206 = vmul.f32 %v131, %v131
  %v207 = vmul.f32 %v134, %v134
  %v208 = vmul.f32 %v136, %v136
  %v209 = vmul.f32 %v139, %v139
  %v210 = vmul.f32 %v141, %v141
  %v211 = vmul.f32 %v144, %v144
  %v212 = vmul.f32 %v146, %v146
  %v213 = vmul.f32 %v149, %v149
  %v214 = vmul.f32 %v151, %v151
  %v215 = vmul.f32 %v154, %v154
  %v216 = vmul.f32 %v156, %v156
  %v217 = vmul.f32 %v159, %v159
  %v218 = vmul.f32 %v161, %v161
  %v219 = vmul.f32 %v164, %v164
  %v220 = vmul.f32 %v166, %v166
  %v221 = vadd.f32 %v205, %v206
  %v222 = vadd.f32 %v221, %v207
  %v223 = vadd.f32 %v222, %v208
  %v224 = vadd.f32 %v223, %v209
  %v225 = vadd.f32 %v224, %v210
  %v226 = vadd.f32 %v225, %v211
  %v227 = vadd.f32 %v226, %v212
  %v228 = vadd.f32 %v227, %v213
  %v229 = vadd.f32 %v228, %v214
  %v230 = vadd.f32 %v229, %v215
  %v231 = vadd.f32 %v230, %v216
  %v232 = vadd.f32 %v231, %v217
  %v233 = vadd.f32 %v232, %v218
  %v234 = vadd.f32 %v233, %v219
  %v235 = vadd.f32 %v234, %v220
  %v236 = vrot.slane %v235, 4
  %v237 = vadd.f32 %v235, %v236
  %v238 = vrot.slane %v237, 2
  %v239 = vadd.f32 %v237, %v238
  %v240 = vrot.slane %v239, 1
  %v241 = vadd.f32 %v239, %v240
  %vm242 = vcmask 1040384
  %v243 = vsel %vm242, %v204, %v241
  %v244 = vsel %vm115, %v243, 0.0
  %245 = vst [vmem:[%s3] sm:$0xff] %v244
  // Predicated region
  $region10: #{basic_block_forward.5} parent=0 // pred_check
    _
  $region11: #{basic_block_forward.5} parent=0 // pred_check_branch
    %247 = sbr.rel (0) target = $region13
  $region12: #{basic_block_forward.5} parent=0 // pred_region
    _
  $region13: #{basic_block_forward.5} parent=0 // pred_fallthru
    _
  // Predicated region
  $region14: #{basic_block_forward.5} parent=0 // pred_check
    _
  $region15: #{basic_block_forward.5} parent=0 // pred_check_branch
    %249 = sbr.rel (0) target = $region17
  $region16: #{basic_block_forward.5} parent=0 // pred_region
    _
  $region17: #{basic_block_forward.5} parent=0 // pred_fallthru
    _
  // Predicated region
  $region18: #{basic_block_forward.5} parent=0 // pred_check
    _
  $region19: #{basic_block_forward.5} parent=0 // pred_check_branch
    %251 = sbr.rel (0) target = $region21
  $region20: #{basic_block_forward.5} parent=0 // pred_region
    _
  $region21: #{basic_block_forward.5} parent=0 // pred_fallthru
    _
  // Predicated region
  $region22: #{basic_block_forward.5} parent=0 // pred_check
    _
  $region23: #{basic_block_forward.5} parent=0 // pred_check_branch
    %253 = sbr.rel (0) target = $region25
  $region24: #{basic_block_forward.5} parent=0 // pred_region
    _
  $region25: #{basic_block_forward.5} parent=0 // pred_fallthru
    _

// kernel: basic_block_forward.7
$region0: #{basic_block_forward.7}
  #allocation0 [shape = 'u32[]', space=smem, size = 0x4, offset = 0x4, fixed_abs, tag = 'smem constant byte address 0x4 - core index']
  #allocation1 [shape = 'u32[72,128]{1,0:T(1,128)}', space=vmem, size = 0x9000, scoped, tag = 'internal scratch']
  %s0 = inlined_call_operand.vmem [shape: bf16[128,72], index: 0, kind: input, shape index: {}]
  %s1 = inlined_call_operand.vmem [shape: bf16[72,128], index: 1, kind: input, shape index: {}]
  %s2 = inlined_call_operand.vmem [shape: f32[128,128], index: 2, kind: output, shape index: {0}]
  %s3 = inlined_call_operand.vmem [shape: f32[8,128], index: 3, kind: output, shape index: {1}]
  %4 = xla_tuple %s2, %s3
  %s5 = sld [smem:[#allocation0]]
  $region26: #{basic_block_forward.7} parent=0
    _
  %s7 = ssub.s32 1, %s5
  %s8 = scalar_select 0, %s7, %s5
  // Predicated region
  $region2: #{basic_block_forward.7} parent=0 // pred_check
    _
  $region3: #{basic_block_forward.7} parent=0 // pred_check_branch
    %10 = sbr.rel (0) target = $region5
  $region4: #{basic_block_forward.7} parent=0 // pred_region
    _
  $region5: #{basic_block_forward.7} parent=0 // pred_fallthru
    _
  // Predicated region
  $region6: #{basic_block_forward.7} parent=0 // pred_check
    _
  $region7: #{basic_block_forward.7} parent=0 // pred_check_branch
    %12 = sbr.rel (0) target = $region9
  $region8: #{basic_block_forward.7} parent=0 // pred_region
    _
  $region9: #{basic_block_forward.7} parent=0 // pred_fallthru
    _
  %v14 = vld [vmem:[%s0] sm:$0xf]
  %v15 = vld [vmem:[%s0 + $0x4] sm:$0xf]
  %v16 = vld [vmem:[%s0 + $0x8] sm:$0xf]
  %v17 = vld [vmem:[%s0 + $0xc] sm:$0xf]
  %v18 = vld [vmem:[%s0 + $0x10] sm:$0xf]
  %v19 = vld [vmem:[%s0 + $0x14] sm:$0xf]
  %v20 = vld [vmem:[%s0 + $0x18] sm:$0xf]
  %v21 = vld [vmem:[%s0 + $0x1c] sm:$0xf]
  %v22 = vld [vmem:[%s0 + $0x20] sm:$0xf]
  %v23 = vld [vmem:[%s0 + $0x24] sm:$0xf]
  %v24 = vld [vmem:[%s0 + $0x28] sm:$0xf]
  %v25 = vld [vmem:[%s0 + $0x2c] sm:$0xf]
  %v26 = vld [vmem:[%s0 + $0x30] sm:$0xf]
  %v27 = vld [vmem:[%s0 + $0x34] sm:$0xf]
  %v28 = vld [vmem:[%s0 + $0x38] sm:$0xf]
  %v29 = vld [vmem:[%s0 + $0x3c] sm:$0xf]
  %v30 = vld [vmem:[%s1] sm:$0xf]
  %v31 = vld [vmem:[%s1 + $0x4] sm:$0xf]
  %v32 = vld [vmem:[%s1 + $0x8] sm:$0xf]
  %v33 = vld [vmem:[%s1 + $0xc] sm:$0xf]
  %v34 = vld [vmem:[%s1 + $0x10] sm:$0xf]
  %v35 = vld [vmem:[%s1 + $0x14] sm:$0xf]
  %v36 = vld [vmem:[%s1 + $0x18] sm:$0xf]
  %v37 = vld [vmem:[%s1 + $0x1c] sm:$0xf]
  %v38 = vld [vmem:[%s1 + $0x20] sm:$0xf]
  %v55 = vunpack.c.l.b16 %v14
  %v56 = vunpack.c.l.b16 %v15
  %v57 = vunpack.c.l.b16 %v16
  %v58 = vunpack.c.l.b16 %v17
  %v59 = vunpack.c.l.b16 %v18
  %v60 = vunpack.c.l.b16 %v19
  %v61 = vunpack.c.l.b16 %v20
  %v62 = vunpack.c.l.b16 %v21
  %v63 = vunpack.c.l.b16 %v22
  %v64 = vunpack.c.l.b16 %v23
  %v65 = vunpack.c.l.b16 %v24
  %v66 = vunpack.c.l.b16 %v25
  %v67 = vunpack.c.l.b16 %v26
  %v68 = vunpack.c.l.b16 %v27
  %v69 = vunpack.c.l.b16 %v28
  %v70 = vunpack.c.l.b16 %v29
  %v71 = vpack.c.b16 %v56, %v55
  %v72 = vpack.c.b16 %v58, %v57
  %v73 = vpack.c.b16 %v60, %v59
  %v74 = vpack.c.b16 %v62, %v61
  %v75 = vpack.c.b16 %v64, %v63
  %v76 = vpack.c.b16 %v66, %v65
  %v77 = vpack.c.b16 %v68, %v67
  %v78 = vpack.c.b16 %v70, %v69
  %v88 = vunpack.c.l.b16 %v30
  %v89 = vunpack.c.l.b16 %v31
  %v90 = vunpack.c.l.b16 %v32
  %v91 = vunpack.c.l.b16 %v33
  %v92 = vunpack.c.l.b16 %v34
  %v93 = vunpack.c.l.b16 %v35
  %v94 = vunpack.c.l.b16 %v36
  %v95 = vunpack.c.l.b16 %v37
  %v96 = vunpack.c.l.b16 %v38
  %v97 = vpack.c.b16 %v89, %v88
  %v98 = vpack.c.b16 %v91, %v90
  %v99 = vpack.c.b16 %v93, %v92
  %v100 = vpack.c.b16 %v95, %v94
  %v101 = vpack.c.b16 %v96, %v96
  %vm106 = vcmask 588800
  %v108 = vsel %vm106, %v71, 0
  %v111 = vsel %vm106, %v72, 0
  %v114 = vsel %vm106, %v73, 0
  %v117 = vsel %vm106, %v74, 0
  %v120 = vsel %vm106, %v75, 0
  %v123 = vsel %vm106, %v76, 0
  %v126 = vsel %vm106, %v77, 0
  %v129 = vsel %vm106, %v78, 0
  %vm131 = vcmask 1043456
  %v133 = vsel %vm131, %v101, 0
  %135 = vmatpush.bf16.msra.mxu0 0
  %136 = vmatpush.bf16.msra.mxu0 0
  %137 = vmatpush.bf16.msra.mxu0 0
  %138 = vmatpush.bf16.msra.mxu0 %v133
  %139 = vmatpush.bf16.msra.mxu0 %v100
  %140 = vmatpush.bf16.msra.mxu0 %v99
  %141 = vmatpush.bf16.msra.mxu0 %v98
  %142 = vmatpush.bf16.msra.mxu0 %v97
  %143 = vmatmul.bf16.gmra.mxu0 %v108
  %v144 = vpop.f32.mrf.mxu0
  %v145 = vadd.f32 0.0, %v144
  %v146 = vpop.f32.mrf.mxu0
  %v147 = vadd.f32 0.0, %v146
  %148 = vmatmul.bf16.gmra.mxu0 %v111
  %v149 = vpop.f32.mrf.mxu0
  %v150 = vadd.f32 0.0, %v149
  %v151 = vpop.f32.mrf.mxu0
  %v152 = vadd.f32 0.0, %v151
  %153 = vmatmul.bf16.gmra.mxu0 %v114
  %v154 = vpop.f32.mrf.mxu0
  %v155 = vadd.f32 0.0, %v154
  %v156 = vpop.f32.mrf.mxu0
  %v157 = vadd.f32 0.0, %v156
  %158 = vmatmul.bf16.gmra.mxu0 %v117
  %v159 = vpop.f32.mrf.mxu0
  %v160 = vadd.f32 0.0, %v159
  %v161 = vpop.f32.mrf.mxu0
  %v162 = vadd.f32 0.0, %v161
  %163 = vmatmul.bf16.gmra.mxu0 %v120
  %v164 = vpop.f32.mrf.mxu0
  %v165 = vadd.f32 0.0, %v164
  %v166 = vpop.f32.mrf.mxu0
  %v167 = vadd.f32 0.0, %v166
  %168 = vmatmul.bf16.gmra.mxu0 %v123
  %v169 = vpop.f32.mrf.mxu0
  %v170 = vadd.f32 0.0, %v169
  %v171 = vpop.f32.mrf.mxu0
  %v172 = vadd.f32 0.0, %v171
  %173 = vmatmul.bf16.gmra.mxu0 %v126
  %v174 = vpop.f32.mrf.mxu0
  %v175 = vadd.f32 0.0, %v174
  %v176 = vpop.f32.mrf.mxu0
  %v177 = vadd.f32 0.0, %v176
  %178 = vmatmul.bf16.gmra.mxu0 %v129
  %v179 = vpop.f32.mrf.mxu0
  %v180 = vadd.f32 0.0, %v179
  %v181 = vpop.f32.mrf.mxu0
  %v182 = vadd.f32 0.0, %v181
  %183 = vdwg.mxu0
  %184 = vst [vmem:[%s2] sm:$0xff] %v145
  %185 = vst [vmem:[%s2 + $0x8] sm:$0xff] %v147
  %186 = vst [vmem:[%s2 + $0x10] sm:$0xff] %v150
  %187 = vst [vmem:[%s2 + $0x18] sm:$0xff] %v152
  %188 = vst [vmem:[%s2 + $0x20] sm:$0xff] %v155
  %189 = vst [vmem:[%s2 + $0x28] sm:$0xff] %v157
  %190 = vst [vmem:[%s2 + $0x30] sm:$0xff] %v160
  %191 = vst [vmem:[%s2 + $0x38] sm:$0xff] %v162
  %192 = vst [vmem:[%s2 + $0x40] sm:$0xff] %v165
  %193 = vst [vmem:[%s2 + $0x48] sm:$0xff] %v167
  %194 = vst [vmem:[%s2 + $0x50] sm:$0xff] %v170
  %195 = vst [vmem:[%s2 + $0x58] sm:$0xff] %v172
  %196 = vst [vmem:[%s2 + $0x60] sm:$0xff] %v175
  %197 = vst [vmem:[%s2 + $0x68] sm:$0xff] %v177
  %198 = vst [vmem:[%s2 + $0x70] sm:$0xff] %v180
  %199 = vst [vmem:[%s2 + $0x78] sm:$0xff] %v182
  %v200 = vadd.f32 %v145, %v147
  %v201 = vadd.f32 %v200, %v150
  %v202 = vadd.f32 %v201, %v152
  %v203 = vadd.f32 %v202, %v155
  %v204 = vadd.f32 %v203, %v157
  %v205 = vadd.f32 %v204, %v160
  %v206 = vadd.f32 %v205, %v162
  %v207 = vadd.f32 %v206, %v165
  %v208 = vadd.f32 %v207, %v167
  %v209 = vadd.f32 %v208, %v170
  %v210 = vadd.f32 %v209, %v172
  %v211 = vadd.f32 %v210, %v175
  %v212 = vadd.f32 %v211, %v177
  %v213 = vadd.f32 %v212, %v180
  %v214 = vadd.f32 %v213, %v182
  %v215 = vrot.slane %v214, 4
  %v216 = vadd.f32 %v214, %v215
  %v217 = vrot.slane %v216, 2
  %v218 = vadd.f32 %v216, %v217
  %v219 = vrot.slane %v218, 1
  %v220 = vadd.f32 %v218, %v219
  %v221 = vmul.f32 %v145, %v145
  %v222 = vmul.f32 %v147, %v147
  %v223 = vmul.f32 %v150, %v150
  %v224 = vmul.f32 %v152, %v152
  %v225 = vmul.f32 %v155, %v155
  %v226 = vmul.f32 %v157, %v157
  %v227 = vmul.f32 %v160, %v160
  %v228 = vmul.f32 %v162, %v162
  %v229 = vmul.f32 %v165, %v165
  %v230 = vmul.f32 %v167, %v167
  %v231 = vmul.f32 %v170, %v170
  %v232 = vmul.f32 %v172, %v172
  %v233 = vmul.f32 %v175, %v175
  %v234 = vmul.f32 %v177, %v177
  %v235 = vmul.f32 %v180, %v180
  %v236 = vmul.f32 %v182, %v182
  %v237 = vadd.f32 %v221, %v222
  %v238 = vadd.f32 %v237, %v223
  %v239 = vadd.f32 %v238, %v224
  %v240 = vadd.f32 %v239, %v225
  %v241 = vadd.f32 %v240, %v226
  %v242 = vadd.f32 %v241, %v227
  %v243 = vadd.f32 %v242, %v228
  %v244 = vadd.f32 %v243, %v229
  %v245 = vadd.f32 %v244, %v230
  %v246 = vadd.f32 %v245, %v231
  %v247 = vadd.f32 %v246, %v232
  %v248 = vadd.f32 %v247, %v233
  %v249 = vadd.f32 %v248, %v234
  %v250 = vadd.f32 %v249, %v235
  %v251 = vadd.f32 %v250, %v236
  %v252 = vrot.slane %v251, 4
  %v253 = vadd.f32 %v251, %v252
  %v254 = vrot.slane %v253, 2
  %v255 = vadd.f32 %v253, %v254
  %v256 = vrot.slane %v255, 1
  %v257 = vadd.f32 %v255, %v256
  %vm258 = vcmask 1040384
  %v259 = vsel %vm258, %v220, %v257
  %vm260 = vcmask 1041408
  %v261 = vsel %vm260, %v259, 0.0
  %262 = vst [vmem:[%s3] sm:$0xff] %v261
  // Predicated region
  $region10: #{basic_block_forward.7} parent=0 // pred_check
    _
  $region11: #{basic_block_forward.7} parent=0 // pred_check_branch
    %264 = sbr.rel (0) target = $region13
  $region12: #{basic_block_forward.7} parent=0 // pred_region
    _
  $region13: #{basic_block_forward.7} parent=0 // pred_fallthru
    _
  // Predicated region
  $region14: #{basic_block_forward.7} parent=0 // pred_check
    _
  $region15: #{basic_block_forward.7} parent=0 // pred_check_branch
    %266 = sbr.rel (0) target = $region17
  $region16: #{basic_block_forward.7} parent=0 // pred_region
    _
  $region17: #{basic_block_forward.7} parent=0 // pred_fallthru
    _
  // Predicated region
  $region18: #{basic_block_forward.7} parent=0 // pred_check
    _
  $region19: #{basic_block_forward.7} parent=0 // pred_check_branch
    %268 = sbr.rel (0) target = $region21
  $region20: #{basic_block_forward.7} parent=0 // pred_region
    _
  $region21: #{basic_block_forward.7} parent=0 // pred_fallthru
    _
  // Predicated region
  $region22: #{basic_block_forward.7} parent=0 // pred_check
    _
  $region23: #{basic_block_forward.7} parent=0 // pred_check_branch
    %270 = sbr.rel (0) target = $region25
  $region24: #{basic_block_forward.7} parent=0 // pred_region
    _
  $region25: #{basic_block_forward.7} parent=0 // pred_fallthru
    _

// kernel: basic_block_forward.8
$region0: #{basic_block_forward.8}
  #allocation0 [shape = 'u32[]', space=smem, size = 0x4, offset = 0x4, fixed_abs, tag = 'smem constant byte address 0x4 - core index']
  #allocation1 [shape = 'u32[72,128]{1,0:T(1,128)}', space=vmem, size = 0x9000, scoped, tag = 'internal scratch']
  %s0 = inlined_call_operand.vmem [shape: bf16[128,4], index: 0, kind: input, shape index: {}]
  %s1 = inlined_call_operand.vmem [shape: bf16[4,128], index: 1, kind: input, shape index: {}]
  %s2 = inlined_call_operand.vmem [shape: f32[128,128], index: 2, kind: output, shape index: {0}]
  %s3 = inlined_call_operand.vmem [shape: f32[8,128], index: 3, kind: output, shape index: {1}]
  %4 = xla_tuple %s2, %s3
  %s5 = sld [smem:[#allocation0]]
  $region26: #{basic_block_forward.8} parent=0
    _
  %s7 = ssub.s32 1, %s5
  %s8 = scalar_select 0, %s7, %s5
  // Predicated region
  $region2: #{basic_block_forward.8} parent=0 // pred_check
    _
  $region3: #{basic_block_forward.8} parent=0 // pred_check_branch
    %10 = sbr.rel (0) target = $region5
  $region4: #{basic_block_forward.8} parent=0 // pred_region
    _
  $region5: #{basic_block_forward.8} parent=0 // pred_fallthru
    _
  // Predicated region
  $region6: #{basic_block_forward.8} parent=0 // pred_check
    _
  $region7: #{basic_block_forward.8} parent=0 // pred_check_branch
    %12 = sbr.rel (0) target = $region9
  $region8: #{basic_block_forward.8} parent=0 // pred_region
    _
  $region9: #{basic_block_forward.8} parent=0 // pred_fallthru
    _
  %v14 = vld [vmem:[%s0] sm:$0xf]
  %v15 = vld [vmem:[%s0 + $0x4] sm:$0xf]
  %v16 = vld [vmem:[%s0 + $0x8] sm:$0xf]
  %v17 = vld [vmem:[%s0 + $0xc] sm:$0xf]
  %v18 = vld [vmem:[%s0 + $0x10] sm:$0xf]
  %v19 = vld [vmem:[%s0 + $0x14] sm:$0xf]
  %v20 = vld [vmem:[%s0 + $0x18] sm:$0xf]
  %v21 = vld [vmem:[%s0 + $0x1c] sm:$0xf]
  %v22 = vld [vmem:[%s0 + $0x20] sm:$0xf]
  %v23 = vld [vmem:[%s0 + $0x24] sm:$0xf]
  %v24 = vld [vmem:[%s0 + $0x28] sm:$0xf]
  %v25 = vld [vmem:[%s0 + $0x2c] sm:$0xf]
  %v26 = vld [vmem:[%s0 + $0x30] sm:$0xf]
  %v27 = vld [vmem:[%s0 + $0x34] sm:$0xf]
  %v28 = vld [vmem:[%s0 + $0x38] sm:$0xf]
  %v29 = vld [vmem:[%s0 + $0x3c] sm:$0xf]
  %v30 = vld [vmem:[%s1] sm:$0x3]
  %v47 = vunpack.c.l.b16 %v14
  %v48 = vunpack.c.l.b16 %v15
  %v49 = vunpack.c.l.b16 %v16
  %v50 = vunpack.c.l.b16 %v17
  %v51 = vunpack.c.l.b16 %v18
  %v52 = vunpack.c.l.b16 %v19
  %v53 = vunpack.c.l.b16 %v20
  %v54 = vunpack.c.l.b16 %v21
  %v55 = vunpack.c.l.b16 %v22
  %v56 = vunpack.c.l.b16 %v23
  %v57 = vunpack.c.l.b16 %v24
  %v58 = vunpack.c.l.b16 %v25
  %v59 = vunpack.c.l.b16 %v26
  %v60 = vunpack.c.l.b16 %v27
  %v61 = vunpack.c.l.b16 %v28
  %v62 = vunpack.c.l.b16 %v29
  %v63 = vpack.c.b16 %v48, %v47
  %v64 = vpack.c.b16 %v50, %v49
  %v65 = vpack.c.b16 %v52, %v51
  %v66 = vpack.c.b16 %v54, %v53
  %v67 = vpack.c.b16 %v56, %v55
  %v68 = vpack.c.b16 %v58, %v57
  %v69 = vpack.c.b16 %v60, %v59
  %v70 = vpack.c.b16 %v62, %v61
  %vm71 = vcmask 31744
  %v73 = vsel %vm71, %v63, 0
  %v76 = vsel %vm71, %v64, 0
  %v79 = vsel %vm71, %v65, 0
  %v82 = vsel %vm71, %v66, 0
  %v85 = vsel %vm71, %v67, 0
  %v88 = vsel %vm71, %v68, 0
  %v91 = vsel %vm71, %v69, 0
  %v94 = vsel %vm71, %v70, 0
  %vm96 = vcmask 1041408
  %v98 = vsel %vm96, %v30, 0
  %100 = vmatpush.bf16.msra.mxu0 0
  %101 = vmatpush.bf16.msra.mxu0 0
  %102 = vmatpush.bf16.msra.mxu0 0
  %103 = vmatpush.bf16.msra.mxu0 0
  %104 = vmatpush.bf16.msra.mxu0 0
  %105 = vmatpush.bf16.msra.mxu0 0
  %106 = vmatpush.bf16.msra.mxu0 0
  %107 = vmatpush.bf16.msra.mxu0 %v98
  %108 = vmatmul.bf16.gmra.mxu0 %v73
  %v109 = vpop.f32.mrf.mxu0
  %v110 = vadd.f32 0.0, %v109
  %v111 = vpop.f32.mrf.mxu0
  %v112 = vadd.f32 0.0, %v111
  %113 = vmatmul.bf16.gmra.mxu0 %v76
  %v114 = vpop.f32.mrf.mxu0
  %v115 = vadd.f32 0.0, %v114
  %v116 = vpop.f32.mrf.mxu0
  %v117 = vadd.f32 0.0, %v116
  %118 = vmatmul.bf16.gmra.mxu0 %v79
  %v119 = vpop.f32.mrf.mxu0
  %v120 = vadd.f32 0.0, %v119
  %v121 = vpop.f32.mrf.mxu0
  %v122 = vadd.f32 0.0, %v121
  %123 = vmatmul.bf16.gmra.mxu0 %v82
  %v124 = vpop.f32.mrf.mxu0
  %v125 = vadd.f32 0.0, %v124
  %v126 = vpop.f32.mrf.mxu0
  %v127 = vadd.f32 0.0, %v126
  %128 = vmatmul.bf16.gmra.mxu0 %v85
  %v129 = vpop.f32.mrf.mxu0
  %v130 = vadd.f32 0.0, %v129
  %v131 = vpop.f32.mrf.mxu0
  %v132 = vadd.f32 0.0, %v131
  %133 = vmatmul.bf16.gmra.mxu0 %v88
  %v134 = vpop.f32.mrf.mxu0
  %v135 = vadd.f32 0.0, %v134
  %v136 = vpop.f32.mrf.mxu0
  %v137 = vadd.f32 0.0, %v136
  %138 = vmatmul.bf16.gmra.mxu0 %v91
  %v139 = vpop.f32.mrf.mxu0
  %v140 = vadd.f32 0.0, %v139
  %v141 = vpop.f32.mrf.mxu0
  %v142 = vadd.f32 0.0, %v141
  %143 = vmatmul.bf16.gmra.mxu0 %v94
  %v144 = vpop.f32.mrf.mxu0
  %v145 = vadd.f32 0.0, %v144
  %v146 = vpop.f32.mrf.mxu0
  %v147 = vadd.f32 0.0, %v146
  %148 = vdwg.mxu0
  %149 = vst [vmem:[%s2] sm:$0xff] %v110
  %150 = vst [vmem:[%s2 + $0x8] sm:$0xff] %v112
  %151 = vst [vmem:[%s2 + $0x10] sm:$0xff] %v115
  %152 = vst [vmem:[%s2 + $0x18] sm:$0xff] %v117
  %153 = vst [vmem:[%s2 + $0x20] sm:$0xff] %v120
  %154 = vst [vmem:[%s2 + $0x28] sm:$0xff] %v122
  %155 = vst [vmem:[%s2 + $0x30] sm:$0xff] %v125
  %156 = vst [vmem:[%s2 + $0x38] sm:$0xff] %v127
  %157 = vst [vmem:[%s2 + $0x40] sm:$0xff] %v130
  %158 = vst [vmem:[%s2 + $0x48] sm:$0xff] %v132
  %159 = vst [vmem:[%s2 + $0x50] sm:$0xff] %v135
  %160 = vst [vmem:[%s2 + $0x58] sm:$0xff] %v137
  %161 = vst [vmem:[%s2 + $0x60] sm:$0xff] %v140
  %162 = vst [vmem:[%s2 + $0x68] sm:$0xff] %v142
  %163 = vst [vmem:[%s2 + $0x70] sm:$0xff] %v145
  %164 = vst [vmem:[%s2 + $0x78] sm:$0xff] %v147
  %v165 = vadd.f32 %v110, %v112
  %v166 = vadd.f32 %v165, %v115
  %v167 = vadd.f32 %v166, %v117
  %v168 = vadd.f32 %v167, %v120
  %v169 = vadd.f32 %v168, %v122
  %v170 = vadd.f32 %v169, %v125
  %v171 = vadd.f32 %v170, %v127
  %v172 = vadd.f32 %v171, %v130
  %v173 = vadd.f32 %v172, %v132
  %v174 = vadd.f32 %v173, %v135
  %v175 = vadd.f32 %v174, %v137
  %v176 = vadd.f32 %v175, %v140
  %v177 = vadd.f32 %v176, %v142
  %v178 = vadd.f32 %v177, %v145
  %v179 = vadd.f32 %v178, %v147
  %v180 = vrot.slane %v179, 4
  %v181 = vadd.f32 %v179, %v180
  %v182 = vrot.slane %v181, 2
  %v183 = vadd.f32 %v181, %v182
  %v184 = vrot.slane %v183, 1
  %v185 = vadd.f32 %v183, %v184
  %v186 = vmul.f32 %v110, %v110
  %v187 = vmul.f32 %v112, %v112
  %v188 = vmul.f32 %v115, %v115
  %v189 = vmul.f32 %v117, %v117
  %v190 = vmul.f32 %v120, %v120
  %v191 = vmul.f32 %v122, %v122
  %v192 = vmul.f32 %v125, %v125
  %v193 = vmul.f32 %v127, %v127
  %v194 = vmul.f32 %v130, %v130
  %v195 = vmul.f32 %v132, %v132
  %v196 = vmul.f32 %v135, %v135
  %v197 = vmul.f32 %v137, %v137
  %v198 = vmul.f32 %v140, %v140
  %v199 = vmul.f32 %v142, %v142
  %v200 = vmul.f32 %v145, %v145
  %v201 = vmul.f32 %v147, %v147
  %v202 = vadd.f32 %v186, %v187
  %v203 = vadd.f32 %v202, %v188
  %v204 = vadd.f32 %v203, %v189
  %v205 = vadd.f32 %v204, %v190
  %v206 = vadd.f32 %v205, %v191
  %v207 = vadd.f32 %v206, %v192
  %v208 = vadd.f32 %v207, %v193
  %v209 = vadd.f32 %v208, %v194
  %v210 = vadd.f32 %v209, %v195
  %v211 = vadd.f32 %v210, %v196
  %v212 = vadd.f32 %v211, %v197
  %v213 = vadd.f32 %v212, %v198
  %v214 = vadd.f32 %v213, %v199
  %v215 = vadd.f32 %v214, %v200
  %v216 = vadd.f32 %v215, %v201
  %v217 = vrot.slane %v216, 4
  %v218 = vadd.f32 %v216, %v217
  %v219 = vrot.slane %v218, 2
  %v220 = vadd.f32 %v218, %v219
  %v221 = vrot.slane %v220, 1
  %v222 = vadd.f32 %v220, %v221
  %vm223 = vcmask 1040384
  %v224 = vsel %vm223, %v185, %v222
  %v225 = vsel %vm96, %v224, 0.0
  %226 = vst [vmem:[%s3] sm:$0xff] %v225
  // Predicated region
  $region10: #{basic_block_forward.8} parent=0 // pred_check
    _
  $region11: #{basic_block_forward.8} parent=0 // pred_check_branch
    %228 = sbr.rel (0) target = $region13
  $region12: #{basic_block_forward.8} parent=0 // pred_region
    _
  $region13: #{basic_block_forward.8} parent=0 // pred_fallthru
    _
  // Predicated region
  $region14: #{basic_block_forward.8} parent=0 // pred_check
    _
  $region15: #{basic_block_forward.8} parent=0 // pred_check_branch
    %230 = sbr.rel (0) target = $region17
  $region16: #{basic_block_forward.8} parent=0 // pred_region
    _
  $region17: #{basic_block_forward.8} parent=0 // pred_fallthru
    _
  // Predicated region
  $region18: #{basic_block_forward.8} parent=0 // pred_check
    _
  $region19: #{basic_block_forward.8} parent=0 // pred_check_branch
    %232 = sbr.rel (0) target = $region21
  $region20: #{basic_block_forward.8} parent=0 // pred_region
    _
  $region21: #{basic_block_forward.8} parent=0 // pred_fallthru
    _
  // Predicated region
  $region22: #{basic_block_forward.8} parent=0 // pred_check
    _
  $region23: #{basic_block_forward.8} parent=0 // pred_check_branch
    %234 = sbr.rel (0) target = $region25
  $region24: #{basic_block_forward.8} parent=0 // pred_region
    _
  $region25: #{basic_block_forward.8} parent=0 // pred_fallthru
    _

// kernel: basic_block_forward.9
$region0: #{basic_block_forward.9}
  #allocation0 [shape = 'u32[]', space=smem, size = 0x4, offset = 0x4, fixed_abs, tag = 'smem constant byte address 0x4 - core index']
  #allocation1 [shape = 'u32[72,128]{1,0:T(1,128)}', space=vmem, size = 0x9000, scoped, tag = 'internal scratch']
  %s0 = inlined_call_operand.vmem [shape: f32[128,128], index: 0, kind: input, shape index: {}]
  %s1 = inlined_call_operand.vmem [shape: f32[1,128], index: 1, kind: input, shape index: {}]
  %s2 = inlined_call_operand.vmem [shape: f32[1,128], index: 2, kind: input, shape index: {}]
  %s3 = inlined_call_operand.vmem [shape: f32[128,128], index: 3, kind: input, shape index: {}]
  %s4 = inlined_call_operand.vmem [shape: f32[1,128], index: 4, kind: input, shape index: {}]
  %s5 = inlined_call_operand.vmem [shape: f32[1,128], index: 5, kind: input, shape index: {}]
  %s6 = inlined_call_operand.vmem [shape: f32[128,128], index: 6, kind: output, shape index: {}]
  %s7 = sld [smem:[#allocation0]]
  $region34: #{basic_block_forward.9} parent=0
    _
  %s9 = ssub.s32 1, %s7
  %s10 = scalar_select 0, %s9, %s7
  // Predicated region
  $region2: #{basic_block_forward.9} parent=0 // pred_check
    _
  $region3: #{basic_block_forward.9} parent=0 // pred_check_branch
    %12 = sbr.rel (0) target = $region5
  $region4: #{basic_block_forward.9} parent=0 // pred_region
    _
  $region5: #{basic_block_forward.9} parent=0 // pred_fallthru
    _
  // Predicated region
  $region6: #{basic_block_forward.9} parent=0 // pred_check
    _
  $region7: #{basic_block_forward.9} parent=0 // pred_check_branch
    %14 = sbr.rel (0) target = $region9
  $region8: #{basic_block_forward.9} parent=0 // pred_region
    _
  $region9: #{basic_block_forward.9} parent=0 // pred_fallthru
    _
  // Predicated region
  $region10: #{basic_block_forward.9} parent=0 // pred_check
    _
  $region11: #{basic_block_forward.9} parent=0 // pred_check_branch
    %16 = sbr.rel (0) target = $region13
  $region12: #{basic_block_forward.9} parent=0 // pred_region
    _
  $region13: #{basic_block_forward.9} parent=0 // pred_fallthru
    _
  // Predicated region
  $region14: #{basic_block_forward.9} parent=0 // pred_check
    _
  $region15: #{basic_block_forward.9} parent=0 // pred_check_branch
    %18 = sbr.rel (0) target = $region17
  $region16: #{basic_block_forward.9} parent=0 // pred_region
    _
  $region17: #{basic_block_forward.9} parent=0 // pred_fallthru
    _
  // Predicated region
  $region18: #{basic_block_forward.9} parent=0 // pred_check
    _
  $region19: #{basic_block_forward.9} parent=0 // pred_check_branch
    %20 = sbr.rel (0) target = $region21
  $region20: #{basic_block_forward.9} parent=0 // pred_region
    _
  $region21: #{basic_block_forward.9} parent=0 // pred_fallthru
    _
  // Predicated region
  $region22: #{basic_block_forward.9} parent=0 // pred_check
    _
  $region23: #{basic_block_forward.9} parent=0 // pred_check_branch
    %22 = sbr.rel (0) target = $region25
  $region24: #{basic_block_forward.9} parent=0 // pred_region
    _
  $region25: #{basic_block_forward.9} parent=0 // pred_fallthru
    _
  %v23 = vld [vmem:[%s0] sm:$0xff]
  %v24 = vld [vmem:[%s0 + $0x8] sm:$0xff]
  %v25 = vld [vmem:[%s0 + $0x10] sm:$0xff]
  %v26 = vld [vmem:[%s0 + $0x18] sm:$0xff]
  %v27 = vld [vmem:[%s0 + $0x20] sm:$0xff]
  %v28 = vld [vmem:[%s0 + $0x28] sm:$0xff]
  %v29 = vld [vmem:[%s0 + $0x30] sm:$0xff]
  %v30 = vld [vmem:[%s0 + $0x38] sm:$0xff]
  %v31 = vld [vmem:[%s0 + $0x40] sm:$0xff]
  %v32 = vld [vmem:[%s0 + $0x48] sm:$0xff]
  %v33 = vld [vmem:[%s0 + $0x50] sm:$0xff]
  %v34 = vld [vmem:[%s0 + $0x58] sm:$0xff]
  %v35 = vld [vmem:[%s0 + $0x60] sm:$0xff]
  %v36 = vld [vmem:[%s0 + $0x68] sm:$0xff]
  %v37 = vld [vmem:[%s0 + $0x70] sm:$0xff]
  %v38 = vld [vmem:[%s0 + $0x78] sm:$0xff]
  %v39 = vld [vmem:[%s1] sm:$0x1]
  %v41 = vperm.slane %v39, 0
  %v43 = vmul.f32 %v23, %v41
  %v44 = vmul.f32 %v24, %v41
  %v45 = vmul.f32 %v25, %v41
  %v46 = vmul.f32 %v26, %v41
  %v47 = vmul.f32 %v27, %v41
  %v48 = vmul.f32 %v28, %v41
  %v49 = vmul.f32 %v29, %v41
  %v50 = vmul.f32 %v30, %v41
  %v51 = vmul.f32 %v31, %v41
  %v52 = vmul.f32 %v32, %v41
  %v53 = vmul.f32 %v33, %v41
  %v54 = vmul.f32 %v34, %v41
  %v55 = vmul.f32 %v35, %v41
  %v56 = vmul.f32 %v36, %v41
  %v57 = vmul.f32 %v37, %v41
  %v58 = vmul.f32 %v38, %v41
  %v59 = vld [vmem:[%s2] sm:$0x1]
  %v61 = vperm.slane %v59, 0
  %v63 = vadd.f32 %v43, %v61
  %v64 = vadd.f32 %v44, %v61
  %v65 = vadd.f32 %v45, %v61
  %v66 = vadd.f32 %v46, %v61
  %v67 = vadd.f32 %v47, %v61
  %v68 = vadd.f32 %v48, %v61
  %v69 = vadd.f32 %v49, %v61
  %v70 = vadd.f32 %v50, %v61
  %v71 = vadd.f32 %v51, %v61
  %v72 = vadd.f32 %v52, %v61
  %v73 = vadd.f32 %v53, %v61
  %v74 = vadd.f32 %v54, %v61
  %v75 = vadd.f32 %v55, %v61
  %v76 = vadd.f32 %v56, %v61
  %v77 = vadd.f32 %v57, %v61
  %v78 = vadd.f32 %v58, %v61
  %v79 = vld [vmem:[%s3] sm:$0xff]
  %v80 = vld [vmem:[%s3 + $0x8] sm:$0xff]
  %v81 = vld [vmem:[%s3 + $0x10] sm:$0xff]
  %v82 = vld [vmem:[%s3 + $0x18] sm:$0xff]
  %v83 = vld [vmem:[%s3 + $0x20] sm:$0xff]
  %v84 = vld [vmem:[%s3 + $0x28] sm:$0xff]
  %v85 = vld [vmem:[%s3 + $0x30] sm:$0xff]
  %v86 = vld [vmem:[%s3 + $0x38] sm:$0xff]
  %v87 = vld [vmem:[%s3 + $0x40] sm:$0xff]
  %v88 = vld [vmem:[%s3 + $0x48] sm:$0xff]
  %v89 = vld [vmem:[%s3 + $0x50] sm:$0xff]
  %v90 = vld [vmem:[%s3 + $0x58] sm:$0xff]
  %v91 = vld [vmem:[%s3 + $0x60] sm:$0xff]
  %v92 = vld [vmem:[%s3 + $0x68] sm:$0xff]
  %v93 = vld [vmem:[%s3 + $0x70] sm:$0xff]
  %v94 = vld [vmem:[%s3 + $0x78] sm:$0xff]
  %v95 = vld [vmem:[%s4] sm:$0x1]
  %v97 = vperm.slane %v95, 0
  %v99 = vmul.f32 %v79, %v97
  %v100 = vmul.f32 %v80, %v97
  %v101 = vmul.f32 %v81, %v97
  %v102 = vmul.f32 %v82, %v97
  %v103 = vmul.f32 %v83, %v97
  %v104 = vmul.f32 %v84, %v97
  %v105 = vmul.f32 %v85, %v97
  %v106 = vmul.f32 %v86, %v97
  %v107 = vmul.f32 %v87, %v97
  %v108 = vmul.f32 %v88, %v97
  %v109 = vmul.f32 %v89, %v97
  %v110 = vmul.f32 %v90, %v97
  %v111 = vmul.f32 %v91, %v97
  %v112 = vmul.f32 %v92, %v97
  %v113 = vmul.f32 %v93, %v97
  %v114 = vmul.f32 %v94, %v97
  %v115 = vadd.f32 %v63, %v99
  %v116 = vadd.f32 %v64, %v100
  %v117 = vadd.f32 %v65, %v101
  %v118 = vadd.f32 %v66, %v102
  %v119 = vadd.f32 %v67, %v103
  %v120 = vadd.f32 %v68, %v104
  %v121 = vadd.f32 %v69, %v105
  %v122 = vadd.f32 %v70, %v106
  %v123 = vadd.f32 %v71, %v107
  %v124 = vadd.f32 %v72, %v108
  %v125 = vadd.f32 %v73, %v109
  %v126 = vadd.f32 %v74, %v110
  %v127 = vadd.f32 %v75, %v111
  %v128 = vadd.f32 %v76, %v112
  %v129 = vadd.f32 %v77, %v113
  %v130 = vadd.f32 %v78, %v114
  %v131 = vld [vmem:[%s5] sm:$0x1]
  %v133 = vperm.slane %v131, 0
  %v135 = vadd.f32 %v115, %v133
  %v136 = vadd.f32 %v116, %v133
  %v137 = vadd.f32 %v117, %v133
  %v138 = vadd.f32 %v118, %v133
  %v139 = vadd.f32 %v119, %v133
  %v140 = vadd.f32 %v120, %v133
  %v141 = vadd.f32 %v121, %v133
  %v142 = vadd.f32 %v122, %v133
  %v143 = vadd.f32 %v123, %v133
  %v144 = vadd.f32 %v124, %v133
  %v145 = vadd.f32 %v125, %v133
  %v146 = vadd.f32 %v126, %v133
  %v147 = vadd.f32 %v127, %v133
  %v148 = vadd.f32 %v128, %v133
  %v149 = vadd.f32 %v129, %v133
  %v150 = vadd.f32 %v130, %v133
  %v151 = vmax.f32 %v135, 0.0
  %v152 = vmax.f32 %v136, 0.0
  %v153 = vmax.f32 %v137, 0.0
  %v154 = vmax.f32 %v138, 0.0
  %v155 = vmax.f32 %v139, 0.0
  %v156 = vmax.f32 %v140, 0.0
  %v157 = vmax.f32 %v141, 0.0
  %v158 = vmax.f32 %v142, 0.0
  %v159 = vmax.f32 %v143, 0.0
  %v160 = vmax.f32 %v144, 0.0
  %v161 = vmax.f32 %v145, 0.0
  %v162 = vmax.f32 %v146, 0.0
  %v163 = vmax.f32 %v147, 0.0
  %v164 = vmax.f32 %v148, 0.0
  %v165 = vmax.f32 %v149, 0.0
  %v166 = vmax.f32 %v150, 0.0
  %167 = vst [vmem:[%s6] sm:$0xff] %v151
  %168 = vst [vmem:[%s6 + $0x8] sm:$0xff] %v152
  %169 = vst [vmem:[%s6 + $0x10] sm:$0xff] %v153
  %170 = vst [vmem:[%s6 + $0x18] sm:$0xff] %v154
  %171 = vst [vmem:[%s6 + $0x20] sm:$0xff] %v155
  %172 = vst [vmem:[%s6 + $0x28] sm:$0xff] %v156
  %173 = vst [vmem:[%s6 + $0x30] sm:$0xff] %v157
  %174 = vst [vmem:[%s6 + $0x38] sm:$0xff] %v158
  %175 = vst [vmem:[%s6 + $0x40] sm:$0xff] %v159
  %176 = vst [vmem:[%s6 + $0x48] sm:$0xff] %v160
  %177 = vst [vmem:[%s6 + $0x50] sm:$0xff] %v161
  %178 = vst [vmem:[%s6 + $0x58] sm:$0xff] %v162
  %179 = vst [vmem:[%s6 + $0x60] sm:$0xff] %v163
  %180 = vst [vmem:[%s6 + $0x68] sm:$0xff] %v164
  %181 = vst [vmem:[%s6 + $0x70] sm:$0xff] %v165
  %182 = vst [vmem:[%s6 + $0x78] sm:$0xff] %v166
  // Predicated region
  $region26: #{basic_block_forward.9} parent=0 // pred_check
    _
  $region27: #{basic_block_forward.9} parent=0 // pred_check_branch
    %184 = sbr.rel (0) target = $region29
  $region28: #{basic_block_forward.9} parent=0 // pred_region
    _
  $region29: #{basic_block_forward.9} parent=0 // pred_fallthru
    _
  // Predicated region
  $region30: #{basic_block_forward.9} parent=0 // pred_check
    _
  $region31: #{basic_block_forward.9} parent=0 // pred_check_branch
    %186 = sbr.rel (0) target = $region33
  $region32: #{basic_block_forward.9} parent=0 // pred_region
    _
  $region33: #{basic_block_forward.9} parent=0 // pred_fallthru
    _

</llo_original>
